<compile_context>
chip_gen: v7x
topology: tpu7x:2x2x1
jax: 0.10.0
libtpu: 0.0.40
codegen_flags: <defaults>
</compile_context>

<pallas_src>
import math

import jax
import jax.numpy as jnp
from jax import lax
from jax.experimental import pallas as pl
from jax.experimental.pallas import tpu as pltpu

LN_EPS = 1e-5               # torch.nn.LayerNorm default
_ROW_TILE_CAP = 512         # v6e/v5e-friendly; use 256 on VMEM-tight v7x builds
_F_TILE_CAP = 2048          # FFN hidden-dim tile cap (bounds per-step VMEM)
_VMEM_LIMIT = 64 * 1024 * 1024


def _divisor_tile(n, cap, align):
    """Largest t <= cap with n % t == 0 and t % align == 0, else n (untiled)."""
    if n <= cap:
        return n
    for t in range(cap, align - 1, -1):
        if n % t == 0 and t % align == 0:
            return t
    # TODO(synk): awkward sizes fall back to an untiled block; pad externally
    # if that exceeds the VMEM limit.
    return n


# ---------------------------------------------------------------------------
# Kernel 1/2: fused multi-head attention + residual add + LayerNorm
# ---------------------------------------------------------------------------

def _make_mha_ln_kernel(num_heads, d_k, scale, compute_dtype):
    cd = compute_dtype

    def kernel(xq_ref, xkv_ref, wq_ref, bq_ref, wk_ref, bk_ref, wv_ref, bv_ref,
               wo_ref, bo_ref, g_ref, beta_ref, o_ref, k_scr, v_scr):
        # K/V projection: once per batch element. The q-row-tile axis is the
        # innermost ("arbitrary") grid axis, so the scratch persists across it.
        @pl.when(pl.program_id(1) == 0)
        def _():
            xkv = xkv_ref[...].astype(cd)                       # (Skv, D)
            k_scr[...] = (jnp.dot(xkv, wk_ref[...],
                                  preferred_element_type=jnp.float32)
                          + bk_ref[...]).astype(cd)
            v_scr[...] = (jnp.dot(xkv, wv_ref[...],
                                  preferred_element_type=jnp.float32)
                          + bv_ref[...]).astype(cd)

        xq = xq_ref[...]                                        # (tq, D) f32 residual
        # Full-width query projection; 1/sqrt(d_k) folded into q (f32), then
        # cast once to the MXU input dtype.
        q = ((jnp.dot(xq.astype(cd), wq_ref[...],
                      preferred_element_type=jnp.float32)
              + bq_ref[...]) * scale).astype(cd)                # (tq, D)

        # Per-head attention on static lane slices of the projected tensors.
        # (Static slices avoid dynamic lane-dim indexing; each ctx_h feeds the
        # concatenate immediately, so per-head temporaries die per iteration.)
        ctx_heads = []
        for h in range(num_heads):
            lo = h * d_k
            q_h = q[:, lo:lo + d_k]                             # (tq,  d_k)
            k_h = k_scr[:, lo:lo + d_k]                         # (Skv, d_k)
            v_h = v_scr[:, lo:lo + d_k]                         # (Skv, d_k)
            s = lax.dot_general(q_h, k_h, (((1,), (1,)), ((), ())),
                                preferred_element_type=jnp.float32)  # (tq, Skv)
            s_max = jnp.max(s, axis=-1, keepdims=True)          # f32 element-wise
            e = jnp.exp(s - s_max)
            # approx reciprocal -> EUP slot; ~1e-3 rel deviation vs exact softmax.
            p = e * pl.reciprocal(jnp.sum(e, axis=-1, keepdims=True), approx=True)
            ctx_heads.append(jnp.dot(p.astype(cd), v_h,
                                     preferred_element_type=jnp.float32))
        ctx = ctx_heads[0] if num_heads == 1 else jnp.concatenate(ctx_heads, -1)

        # Full-width output projection + residual + LayerNorm (all f32).
        y = jnp.dot(ctx.astype(cd), wo_ref[...],
                    preferred_element_type=jnp.float32) + bo_ref[...]
        x = xq + y
        mu = jnp.mean(x, axis=-1, keepdims=True)
        xc = x - mu
        var = jnp.mean(xc * xc, axis=-1, keepdims=True)
        o_ref[...] = ((xc * lax.rsqrt(var + LN_EPS)) * g_ref[...]
                      + beta_ref[...]).astype(o_ref.dtype)

    return kernel


def mha_add_layernorm(x_q, x_kv, attn_p, norm_p, num_heads, *,
                      compute_dtype=jnp.float32):
    """LayerNorm(x_q + MultiHeadAttention(x_q, x_kv, x_kv)) in one pallas_call."""
    B, Sq, D = x_q.shape
    Skv = x_kv.shape[1]
    H = num_heads
    d_k = D // H
    cd = compute_dtype
    tq = _divisor_tile(Sq, _ROW_TILE_CAP, 8)
    grid = (B, Sq // tq)

    # Weights shipped already in the MXU compute dtype (bf16 halves weight DMA
    # and VMEM residency); biases / LN params stay f32.
    wq = attn_p["wq"].astype(cd)
    wk = attn_p["wk"].astype(cd)
    wv = attn_p["wv"].astype(cd)
    wo = attn_p["wo"].astype(cd)
    bq = attn_p["bq"].reshape(1, D)
    bk = attn_p["bk"].reshape(1, D)
    bv = attn_p["bv"].reshape(1, D)
    bo = attn_p["bo"].reshape(1, D)
    gamma = norm_p["g"].reshape(1, D)
    beta = norm_p["b"].reshape(1, D)

    kernel = _make_mha_ln_kernel(H, d_k, 1.0 / math.sqrt(d_k), cd)

    def full(shape):
        return pl.BlockSpec(shape, lambda b, i: (0,) * len(shape))

    w_bytes = jnp.dtype(cd).itemsize
    cost = pl.CostEstimate(
        flops=B * (4 * Sq * D * D + 4 * Skv * D * D + 4 * Sq * Skv * D),
        transcendentals=B * H * Sq * Skv,
        bytes_accessed=(4 * 2 * B * Sq * D          # q rows in + out
                        + 4 * B * Skv * D           # kv source, once per batch
                        + w_bytes * 4 * D * D       # weights, once per call
                        + 4 * 6 * D),
    )

    return pl.pallas_call(
        kernel,
        out_shape=jax.ShapeDtypeStruct((B, Sq, D), jnp.float32),
        grid=grid,
        in_specs=[
            pl.BlockSpec((None, tq, D), lambda b, i: (b, i, 0)),    # query rows
            pl.BlockSpec((None, Skv, D), lambda b, i: (b, 0, 0)),   # kv source (per b)
            full((D, D)), full((1, D)),                             # Wq, bq
            full((D, D)), full((1, D)),                             # Wk, bk
            full((D, D)), full((1, D)),                             # Wv, bv
            full((D, D)), full((1, D)),                             # Wo, bo
            full((1, D)), full((1, D)),                             # LN gamma, beta
        ],
        out_specs=pl.BlockSpec((None, tq, D), lambda b, i: (b, i, 0)),
        scratch_shapes=[pltpu.VMEM((Skv, D), cd),    # projected K (reused across q tiles)
                        pltpu.VMEM((Skv, D), cd)],   # projected V
        compiler_params=pltpu.CompilerParams(
            # q-tile axis carries the K/V scratch state -> "arbitrary".
            dimension_semantics=("parallel", "arbitrary"),
            vmem_limit_bytes=_VMEM_LIMIT,
        ),
        cost_estimate=cost,
    )(x_q, x_kv, wq, bq, wk, bk, wv, bv, wo, bo, gamma, beta)
    # TODO(synk): for very long Skv add a KV-tile grid axis with online softmax
    # (flash pattern) to bound the (Skv, D) scratch / (tq, Skv) score tiles.


# ---------------------------------------------------------------------------
# Kernel 3: fused feed-forward + residual add + LayerNorm (hidden dim tiled)
# ---------------------------------------------------------------------------

def _make_ffn_ln_kernel(compute_dtype):
    cd = compute_dtype

    def kernel(x_ref, w1_ref, b1_ref, w2_ref, b2_ref, g_ref, beta_ref, o_ref, acc):
        kf = pl.program_id(2)

        @pl.when(kf == 0)
        def _():
            acc[...] = jnp.zeros_like(acc)

        x = x_ref[...]                                           # (tm, D) f32
        h = jnp.dot(x.astype(cd), w1_ref[...],
                    preferred_element_type=jnp.float32) + b1_ref[...]
        h = jnp.maximum(h, 0.0)                                  # ReLU (per hidden unit)
        acc[...] += jnp.dot(h.astype(cd), w2_ref[...],
                            preferred_element_type=jnp.float32)

        @pl.when(kf == pl.num_programs(2) - 1)
        def _():
            z = x + acc[...] + b2_ref[...]                       # residual + bias2
            mu = jnp.mean(z, axis=-1, keepdims=True)
            zc = z - mu
            var = jnp.mean(zc * zc, axis=-1, keepdims=True)
            o_ref[...] = ((zc * lax.rsqrt(var + LN_EPS)) * g_ref[...]
                          + beta_ref[...]).astype(o_ref.dtype)

    return kernel


def ffn_add_layernorm(x, ffn_p, norm_p, *, compute_dtype=jnp.float32):
    B, S, D = x.shape
    F = ffn_p["w1"].shape[1]
    cd = compute_dtype
    tm = _divisor_tile(S, _ROW_TILE_CAP, 8)
    tf = _divisor_tile(F, _F_TILE_CAP, 128)
    grid = (B, S // tm, F // tf)

    w1 = ffn_p["w1"].astype(cd)
    w2 = ffn_p["w2"].astype(cd)
    b1 = ffn_p["b1"].reshape(1, F)
    b2 = ffn_p["b2"].reshape(1, D)
    gamma = norm_p["g"].reshape(1, D)
    beta = norm_p["b"].reshape(1, D)

    def full(shape):
        return pl.BlockSpec(shape, lambda b, i, kf: (0,) * len(shape))

    w_bytes = jnp.dtype(cd).itemsize
    cost = pl.CostEstimate(
        flops=4 * B * S * D * F,
        transcendentals=0,
        bytes_accessed=4 * 2 * B * S * D + w_bytes * 2 * D * F + 4 * (F + 3 * D),
    )

    return pl.pallas_call(
        _make_ffn_ln_kernel(cd),
        out_shape=jax.ShapeDtypeStruct((B, S, D), jnp.float32),
        grid=grid,
        in_specs=[
            pl.BlockSpec((None, tm, D), lambda b, i, kf: (b, i, 0)),  # rows (+residual)
            pl.BlockSpec((D, tf), lambda b, i, kf: (0, kf)),          # W1 column tile
            pl.BlockSpec((1, tf), lambda b, i, kf: (0, kf)),          # b1 tile
            pl.BlockSpec((tf, D), lambda b, i, kf: (kf, 0)),          # W2 row tile
            full((1, D)),                                             # b2
            full((1, D)), full((1, D)),                               # LN gamma, beta
        ],
        out_specs=pl.BlockSpec((None, tm, D), lambda b, i, kf: (b, i, 0)),
        scratch_shapes=[pltpu.VMEM((tm, D), jnp.float32)],            # F-axis accumulator
        compiler_params=pltpu.CompilerParams(
            dimension_semantics=("parallel", "parallel", "arbitrary"),
            vmem_limit_bytes=_VMEM_LIMIT,
        ),
        cost_estimate=cost,
    )(x, w1, b1, w2, b2, gamma, beta)


# ---------------------------------------------------------------------------
# DecoderLayer forward (eval mode)
# ---------------------------------------------------------------------------

def decoder_layer(params, tgt, cond, num_heads, *, compute_dtype=jnp.float32):
    # TODO(synk): nn.Dropout is train-mode only; eval-mode identity implemented here.
    # TODO(synk): optional tgt_mask / cond_mask not implemented (mask=None path).
    x = mha_add_layernorm(tgt, tgt, params["self_attn"], params["norm1"],
                          num_heads, compute_dtype=compute_dtype)
    x = mha_add_layernorm(x, cond, params["cross_attn"], params["norm2"],
                          num_heads, compute_dtype=compute_dtype)
    x = ffn_add_layernorm(x, params["ffn"], params["norm3"],
                          compute_dtype=compute_dtype)
    return x


# ---------------------------------------------------------------------------
# Pure-JAX reference (PyTorch semantics; optional bf16 MXU inputs mirror kernel)
# ---------------------------------------------------------------------------

def _ln_ref(x, g, b):
    mu = jnp.mean(x, axis=-1, keepdims=True)
    xc = x - mu
    var = jnp.mean(xc * xc, axis=-1, keepdims=True)
    return xc * lax.rsqrt(var + LN_EPS) * g + b


def _mha_ref(p, q_in, kv_in, num_heads, cd):
    B, Sq, D = q_in.shape
    Skv = kv_in.shape[1]
    H = num_heads
    d_k = D // H

    def lin(x, w, b):
        return jnp.dot(x.astype(cd), w.astype(cd),
                       preferred_element_type=jnp.float32) + b

    def split(x, S):
        return x.reshape(B, S, H, d_k).transpose(0, 2, 1, 3)

    # Scale q in f32 before the cast (mirrors the kernel's ordering).
    q = split(lin(q_in, p["wq"], p["bq"]), Sq) / math.sqrt(d_k)
    k = split(lin(kv_in, p["wk"], p["bk"]), Skv)
    v = split(lin(kv_in, p["wv"], p["bv"]), Skv)
    s = jnp.einsum("bhqd,bhkd->bhqk", q.astype(cd), k.astype(cd),
                   preferred_element_type=jnp.float32)
    a = jax.nn.softmax(s, axis=-1)
    ctx = jnp.einsum("bhqk,bhkd->bhqd", a.astype(cd), v.astype(cd),
                     preferred_element_type=jnp.float32)
    ctx = ctx.transpose(0, 2, 1, 3).reshape(B, Sq, D)
    return lin(ctx, p["wo"], p["bo"])


def reference_decoder_layer(params, tgt, cond, num_heads, compute_dtype=jnp.float32):
    cd = compute_dtype
    x = _ln_ref(tgt + _mha_ref(params["self_attn"], tgt, tgt, num_heads, cd),
                params["norm1"]["g"], params["norm1"]["b"])
    x = _ln_ref(x + _mha_ref(params["cross_attn"], x, cond, num_heads, cd),
                params["norm2"]["g"], params["norm2"]["b"])
    h = jnp.maximum(jnp.dot(x.astype(cd), params["ffn"]["w1"].astype(cd),
                            preferred_element_type=jnp.float32)
                    + params["ffn"]["b1"], 0.0)
    y = jnp.dot(h.astype(cd), params["ffn"]["w2"].astype(cd),
                preferred_element_type=jnp.float32) + params["ffn"]["b2"]
    return _ln_ref(x + y, params["norm3"]["g"], params["norm3"]["b"])


# ---------------------------------------------------------------------------
# Params (PyTorch nn.Linear / nn.LayerNorm style init; weights stored as (in, out))
# ---------------------------------------------------------------------------

def _init_linear(key, d_in, d_out):
    kw, kb = jax.random.split(key)
    bound = 1.0 / math.sqrt(d_in)
    w = jax.random.uniform(kw, (d_in, d_out), jnp.float32, -bound, bound)
    b = jax.random.uniform(kb, (d_out,), jnp.float32, -bound, bound)
    return w, b


def init_params(key, d_model, num_heads, dim_feedforward):
    del num_heads
    keys = iter(jax.random.split(key, 13))
    params = {}
    for name in ("self_attn", "cross_attn"):
        p = {}
        for n in ("q", "k", "v", "o"):
            w, b = _init_linear(next(keys), d_model, d_model)
            p[f"w{n}"] = w
            p[f"b{n}"] = b
        params[name] = p
    w1, b1 = _init_linear(next(keys), d_model, dim_feedforward)
    w2, b2 = _init_linear(next(keys), dim_feedforward, d_model)
    params["ffn"] = {"w1": w1, "b1": b1, "w2": w2, "b2": b2}
    for name in ("norm1", "norm2", "norm3"):
        kg, kb = jax.random.split(next(keys))
        params[name] = {
            "g": 1.0 + 0.1 * jax.random.normal(kg, (d_model,), jnp.float32),
            "b": 0.1 * jax.random.normal(kb, (d_model,), jnp.float32),
        }
    return params


# ---------------------------------------------------------------------------
# Main
# ---------------------------------------------------------------------------

if __name__ == "__main__":
    # D=128 keeps all tiles lane-dense (128-wide last dim); d_k = 32.
    B, S_TGT, S_COND, D, H, FF = 2, 8, 16, 128, 4, 256

    root = jax.random.PRNGKey(0)
    kp, kt, kc = jax.random.split(root, 3)
    params = init_params(kp, D, H, FF)
    tgt = jax.random.normal(kt, (B, S_TGT, D), jnp.float32)
    cond = jax.random.normal(kc, (B, S_COND, D), jnp.float32)

    # f32 MXU-input path: tight check against the pure-JAX reference.
    out = jax.block_until_ready(decoder_layer(params, tgt, cond, H))
    ref = reference_decoder_layer(params, tgt, cond, H)
    assert out.shape == (B, S_TGT, D)
    assert bool(jnp.all(jnp.isfinite(out)))
    assert jnp.allclose(out, ref, atol=5e-3, rtol=5e-3), (
        f"f32 mismatch: max abs err {jnp.max(jnp.abs(out - ref))}")

    # bf16 MXU-input path (recommended default on v6e/v7x/v5e): compare against
    # a reference that also uses bf16 matmul inputs with f32 accumulation.
    out_bf = jax.block_until_ready(
        decoder_layer(params, tgt, cond, H, compute_dtype=jnp.bfloat16))
    ref_bf = reference_decoder_layer(params, tgt, cond, H,
                                     compute_dtype=jnp.bfloat16)
    assert bool(jnp.all(jnp.isfinite(out_bf)))
    assert jnp.allclose(out_bf, ref_bf, atol=3e-2, rtol=3e-2), (
        f"bf16 mismatch: max abs err {jnp.max(jnp.abs(out_bf - ref_bf))}")

    print("KERNEL_OK")
</pallas_src>

<mosaic_0001>
module attributes {stable_mosaic.version = 11 : i64} {
  func.func @kernel(%arg0: i32, %arg1: i32, %arg2: memref<1x8x128xf32, #tpu.memory_space<vmem>>, %arg3: memref<1x8x128xf32, #tpu.memory_space<vmem>>, %arg4: memref<128x128xf32, #tpu.memory_space<vmem>>, %arg5: memref<1x128xf32, #tpu.memory_space<vmem>>, %arg6: memref<128x128xf32, #tpu.memory_space<vmem>>, %arg7: memref<1x128xf32, #tpu.memory_space<vmem>>, %arg8: memref<128x128xf32, #tpu.memory_space<vmem>>, %arg9: memref<1x128xf32, #tpu.memory_space<vmem>>, %arg10: memref<128x128xf32, #tpu.memory_space<vmem>>, %arg11: memref<1x128xf32, #tpu.memory_space<vmem>>, %arg12: memref<1x128xf32, #tpu.memory_space<vmem>>, %arg13: memref<1x128xf32, #tpu.memory_space<vmem>>, %arg14: memref<1x8x128xf32, #tpu.memory_space<vmem>>, %arg15: memref<8x128xf32, #tpu.memory_space<vmem>>, %arg16: memref<8x128xf32, #tpu.memory_space<vmem>>) attributes {dimension_semantics = [#tpu.dimension_semantics<parallel>, #tpu.dimension_semantics<arbitrary>], iteration_bounds = array<i64: 2, 1>, scalar_prefetch = 0 : i64, scratch_operands = 2 : i64, tpu.core_type = #tpu.core_type<tc>, window_params = [{transform_indices = @transform_0, window_bounds = array<i64: 1, 8, 128>}, {transform_indices = @transform_1, window_bounds = array<i64: 1, 8, 128>}, {pipeline_mode = #tpu.pipeline_mode<synchronous>, transform_indices = @transform_2, window_bounds = array<i64: 128, 128>}, {pipeline_mode = #tpu.pipeline_mode<synchronous>, transform_indices = @transform_3, window_bounds = array<i64: 1, 128>}, {pipeline_mode = #tpu.pipeline_mode<synchronous>, transform_indices = @transform_4, window_bounds = array<i64: 128, 128>}, {pipeline_mode = #tpu.pipeline_mode<synchronous>, transform_indices = @transform_5, window_bounds = array<i64: 1, 128>}, {pipeline_mode = #tpu.pipeline_mode<synchronous>, transform_indices = @transform_6, window_bounds = array<i64: 128, 128>}, {pipeline_mode = #tpu.pipeline_mode<synchronous>, transform_indices = @transform_7, window_bounds = array<i64: 1, 128>}, {pipeline_mode = #tpu.pipeline_mode<synchronous>, transform_indices = @transform_8, window_bounds = array<i64: 128, 128>}, {pipeline_mode = #tpu.pipeline_mode<synchronous>, transform_indices = @transform_9, window_bounds = array<i64: 1, 128>}, {pipeline_mode = #tpu.pipeline_mode<synchronous>, transform_indices = @transform_10, window_bounds = array<i64: 1, 128>}, {pipeline_mode = #tpu.pipeline_mode<synchronous>, transform_indices = @transform_11, window_bounds = array<i64: 1, 128>}, {transform_indices = @transform_12, window_bounds = array<i64: 1, 8, 128>}]} {
    %c0_i32 = arith.constant 0 : i32
    %0 = arith.cmpi eq, %arg1, %c0_i32 : i32
    %1 = arith.extui %0 : i1 to i32
    %c0_i32_0 = arith.constant 0 : i32
    %2 = arith.cmpi ne, %1, %c0_i32_0 : i32
    scf.if %2 {
      %c0_54 = arith.constant 0 : index
      %c0_55 = arith.constant 0 : index
      %c0_56 = arith.constant 0 : index
      %104 = vector.load %arg3[%c0_54, %c0_55, %c0_56] : memref<1x8x128xf32, #tpu.memory_space<vmem>>, vector<1x8x128xf32>
      %105 = vector.shape_cast %104 : vector<1x8x128xf32> to vector<8x128xf32>
      %c0_57 = arith.constant 0 : index
      %c0_58 = arith.constant 0 : index
      %106 = vector.load %arg6[%c0_57, %c0_58] : memref<128x128xf32, #tpu.memory_space<vmem>>, vector<128x128xf32>
      %cst_59 = arith.constant dense<0.000000e+00> : vector<8x128xf32>
      %107 = tpu.matmul %105, %106, %cst_59 {dimension_numbers = #tpu.dot_dimension_numbers<[1], [0], [0], [1], [0, 0, 1, 1], [], []>} : vector<8x128xf32>, vector<128x128xf32>, vector<8x128xf32> -> vector<8x128xf32>
      %c0_60 = arith.constant 0 : index
      %c0_61 = arith.constant 0 : index
      %108 = vector.load %arg7[%c0_60, %c0_61] : memref<1x128xf32, #tpu.memory_space<vmem>>, vector<1x128xf32>
      %109 = vector.broadcast %108 : vector<1x128xf32> to vector<8x128xf32>
      %110 = arith.addf %107, %109 : vector<8x128xf32>
      %c0_62 = arith.constant 0 : index
      %c0_63 = arith.constant 0 : index
      %111 = vector.load %arg15[%c0_62, %c0_63] : memref<8x128xf32, #tpu.memory_space<vmem>>, vector<8x128xf32>
      tpu.vector_store %arg15[%c0_62, %c0_63], %110 {strides = array<i32>} : memref<8x128xf32, #tpu.memory_space<vmem>>, vector<8x128xf32>,
      %c0_64 = arith.constant 0 : index
      %c0_65 = arith.constant 0 : index
      %112 = vector.load %arg8[%c0_64, %c0_65] : memref<128x128xf32, #tpu.memory_space<vmem>>, vector<128x128xf32>
      %cst_66 = arith.constant dense<0.000000e+00> : vector<8x128xf32>
      %113 = tpu.matmul %105, %112, %cst_66 {dimension_numbers = #tpu.dot_dimension_numbers<[1], [0], [0], [1], [0, 0, 1, 1], [], []>} : vector<8x128xf32>, vector<128x128xf32>, vector<8x128xf32> -> vector<8x128xf32>
      %c0_67 = arith.constant 0 : index
      %c0_68 = arith.constant 0 : index
      %114 = vector.load %arg9[%c0_67, %c0_68] : memref<1x128xf32, #tpu.memory_space<vmem>>, vector<1x128xf32>
      %115 = vector.broadcast %114 : vector<1x128xf32> to vector<8x128xf32>
      %116 = arith.addf %113, %115 : vector<8x128xf32>
      %c0_69 = arith.constant 0 : index
      %c0_70 = arith.constant 0 : index
      %117 = vector.load %arg16[%c0_69, %c0_70] : memref<8x128xf32, #tpu.memory_space<vmem>>, vector<8x128xf32>
      tpu.vector_store %arg16[%c0_69, %c0_70], %116 {strides = array<i32>} : memref<8x128xf32, #tpu.memory_space<vmem>>, vector<8x128xf32>,
    } else {
    }
    %c0 = arith.constant 0 : index
    %c0_1 = arith.constant 0 : index
    %c0_2 = arith.constant 0 : index
    %3 = vector.load %arg2[%c0, %c0_1, %c0_2] : memref<1x8x128xf32, #tpu.memory_space<vmem>>, vector<1x8x128xf32>
    %4 = vector.shape_cast %3 : vector<1x8x128xf32> to vector<8x128xf32>
    %c0_3 = arith.constant 0 : index
    %c0_4 = arith.constant 0 : index
    %5 = vector.load %arg4[%c0_3, %c0_4] : memref<128x128xf32, #tpu.memory_space<vmem>>, vector<128x128xf32>
    %cst = arith.constant dense<0.000000e+00> : vector<8x128xf32>
    %6 = tpu.matmul %4, %5, %cst {dimension_numbers = #tpu.dot_dimension_numbers<[1], [0], [0], [1], [0, 0, 1, 1], [], []>} : vector<8x128xf32>, vector<128x128xf32>, vector<8x128xf32> -> vector<8x128xf32>
    %c0_5 = arith.constant 0 : index
    %c0_6 = arith.constant 0 : index
    %7 = vector.load %arg5[%c0_5, %c0_6] : memref<1x128xf32, #tpu.memory_space<vmem>>, vector<1x128xf32>
    %8 = vector.broadcast %7 : vector<1x128xf32> to vector<8x128xf32>
    %9 = arith.addf %6, %8 : vector<8x128xf32>
    %cst_7 = arith.constant 0.176776692 : f32
    %10 = vector.broadcast %cst_7 : f32 to vector<8x128xf32>
    %11 = arith.mulf %9, %10 : vector<8x128xf32>
    %12 = vector.extract_strided_slice %11 {offsets = [0, 0], sizes = [8, 32], strides = [1, 1]} : vector<8x128xf32> to vector<8x32xf32>
    %c0_8 = arith.constant 0 : index
    %c0_9 = arith.constant 0 : index
    %13 = vector.load %arg15[%c0_8, %c0_9] : memref<8x128xf32, #tpu.memory_space<vmem>>, vector<8x32xf32>
    %c0_10 = arith.constant 0 : index
    %c0_11 = arith.constant 0 : index
    %14 = vector.load %arg16[%c0_10, %c0_11] : memref<8x128xf32, #tpu.memory_space<vmem>>, vector<8x32xf32>
    %cst_12 = arith.constant dense<0.000000e+00> : vector<8x8xf32>
    %15 = tpu.matmul %12, %13, %cst_12 {dimension_numbers = #tpu.dot_dimension_numbers<[1], [1], [0], [0], [0, 0, 1, 0], [], []>} : vector<8x32xf32>, vector<8x32xf32>, vector<8x8xf32> -> vector<8x8xf32>
    %cst_13 = arith.constant dense<0xFF800000> : vector<8xf32>
    %16 = vector.multi_reduction <maximumf>, %15, %cst_13 [1] : vector<8x8xf32> to vector<8xf32>
    %17 = vector.shape_cast %16 : vector<8xf32> to vector<8x1xf32>
    %18 = vector.broadcast %17 : vector<8x1xf32> to vector<8x8xf32>
    %19 = arith.subf %15, %18 : vector<8x8xf32>
    %20 = math.exp %19 : vector<8x8xf32>
    %cst_14 = arith.constant dense<0.000000e+00> : vector<8xf32>
    %21 = vector.multi_reduction <add>, %20, %cst_14 [1] : vector<8x8xf32> to vector<8xf32>
    %22 = vector.shape_cast %21 : vector<8xf32> to vector<8x1xf32>
    %23 = tpu.reciprocal %22 {approx = true} : vector<8x1xf32> -> vector<8x1xf32>
    %24 = vector.broadcast %23 : vector<8x1xf32> to vector<8x8xf32>
    %25 = arith.mulf %20, %24 : vector<8x8xf32>
    %cst_15 = arith.constant dense<0.000000e+00> : vector<8x32xf32>
    %26 = tpu.matmul %25, %14, %cst_15 {dimension_numbers = #tpu.dot_dimension_numbers<[1], [0], [0], [1], [0, 0, 1, 1], [], []>} : vector<8x8xf32>, vector<8x32xf32>, vector<8x32xf32> -> vector<8x32xf32>
    %27 = vector.extract_strided_slice %11 {offsets = [0, 32], sizes = [8, 32], strides = [1, 1]} : vector<8x128xf32> to vector<8x32xf32>
    %c0_16 = arith.constant 0 : index
    %c32 = arith.constant 32 : index
    %28 = vector.load %arg15[%c0_16, %c32] : memref<8x128xf32, #tpu.memory_space<vmem>>, vector<8x32xf32>
    %c0_17 = arith.constant 0 : index
    %c32_18 = arith.constant 32 : index
    %29 = vector.load %arg16[%c0_17, %c32_18] : memref<8x128xf32, #tpu.memory_space<vmem>>, vector<8x32xf32>
    %cst_19 = arith.constant dense<0.000000e+00> : vector<8x8xf32>
    %30 = tpu.matmul %27, %28, %cst_19 {dimension_numbers = #tpu.dot_dimension_numbers<[1], [1], [0], [0], [0, 0, 1, 0], [], []>} : vector<8x32xf32>, vector<8x32xf32>, vector<8x8xf32> -> vector<8x8xf32>
    %cst_20 = arith.constant dense<0xFF800000> : vector<8xf32>
    %31 = vector.multi_reduction <maximumf>, %30, %cst_20 [1] : vector<8x8xf32> to vector<8xf32>
    %32 = vector.shape_cast %31 : vector<8xf32> to vector<8x1xf32>
    %33 = vector.broadcast %32 : vector<8x1xf32> to vector<8x8xf32>
    %34 = arith.subf %30, %33 : vector<8x8xf32>
    %35 = math.exp %34 : vector<8x8xf32>
    %cst_21 = arith.constant dense<0.000000e+00> : vector<8xf32>
    %36 = vector.multi_reduction <add>, %35, %cst_21 [1] : vector<8x8xf32> to vector<8xf32>
    %37 = vector.shape_cast %36 : vector<8xf32> to vector<8x1xf32>
    %38 = tpu.reciprocal %37 {approx = true} : vector<8x1xf32> -> vector<8x1xf32>
    %39 = vector.broadcast %38 : vector<8x1xf32> to vector<8x8xf32>
    %40 = arith.mulf %35, %39 : vector<8x8xf32>
    %cst_22 = arith.constant dense<0.000000e+00> : vector<8x32xf32>
    %41 = tpu.matmul %40, %29, %cst_22 {dimension_numbers = #tpu.dot_dimension_numbers<[1], [0], [0], [1], [0, 0, 1, 1], [], []>} : vector<8x8xf32>, vector<8x32xf32>, vector<8x32xf32> -> vector<8x32xf32>
    %42 = vector.extract_strided_slice %11 {offsets = [0, 64], sizes = [8, 32], strides = [1, 1]} : vector<8x128xf32> to vector<8x32xf32>
    %c0_23 = arith.constant 0 : index
    %c64 = arith.constant 64 : index
    %43 = vector.load %arg15[%c0_23, %c64] : memref<8x128xf32, #tpu.memory_space<vmem>>, vector<8x32xf32>
    %c0_24 = arith.constant 0 : index
    %c64_25 = arith.constant 64 : index
    %44 = vector.load %arg16[%c0_24, %c64_25] : memref<8x128xf32, #tpu.memory_space<vmem>>, vector<8x32xf32>
    %cst_26 = arith.constant dense<0.000000e+00> : vector<8x8xf32>
    %45 = tpu.matmul %42, %43, %cst_26 {dimension_numbers = #tpu.dot_dimension_numbers<[1], [1], [0], [0], [0, 0, 1, 0], [], []>} : vector<8x32xf32>, vector<8x32xf32>, vector<8x8xf32> -> vector<8x8xf32>
    %cst_27 = arith.constant dense<0xFF800000> : vector<8xf32>
    %46 = vector.multi_reduction <maximumf>, %45, %cst_27 [1] : vector<8x8xf32> to vector<8xf32>
    %47 = vector.shape_cast %46 : vector<8xf32> to vector<8x1xf32>
    %48 = vector.broadcast %47 : vector<8x1xf32> to vector<8x8xf32>
    %49 = arith.subf %45, %48 : vector<8x8xf32>
    %50 = math.exp %49 : vector<8x8xf32>
    %cst_28 = arith.constant dense<0.000000e+00> : vector<8xf32>
    %51 = vector.multi_reduction <add>, %50, %cst_28 [1] : vector<8x8xf32> to vector<8xf32>
    %52 = vector.shape_cast %51 : vector<8xf32> to vector<8x1xf32>
    %53 = tpu.reciprocal %52 {approx = true} : vector<8x1xf32> -> vector<8x1xf32>
    %54 = vector.broadcast %53 : vector<8x1xf32> to vector<8x8xf32>
    %55 = arith.mulf %50, %54 : vector<8x8xf32>
    %cst_29 = arith.constant dense<0.000000e+00> : vector<8x32xf32>
    %56 = tpu.matmul %55, %44, %cst_29 {dimension_numbers = #tpu.dot_dimension_numbers<[1], [0], [0], [1], [0, 0, 1, 1], [], []>} : vector<8x8xf32>, vector<8x32xf32>, vector<8x32xf32> -> vector<8x32xf32>
    %57 = vector.extract_strided_slice %11 {offsets = [0, 96], sizes = [8, 32], strides = [1, 1]} : vector<8x128xf32> to vector<8x32xf32>
    %c0_30 = arith.constant 0 : index
    %c96 = arith.constant 96 : index
    %58 = vector.load %arg15[%c0_30, %c96] : memref<8x128xf32, #tpu.memory_space<vmem>>, vector<8x32xf32>
    %c0_31 = arith.constant 0 : index
    %c96_32 = arith.constant 96 : index
    %59 = vector.load %arg16[%c0_31, %c96_32] : memref<8x128xf32, #tpu.memory_space<vmem>>, vector<8x32xf32>
    %cst_33 = arith.constant dense<0.000000e+00> : vector<8x8xf32>
    %60 = tpu.matmul %57, %58, %cst_33 {dimension_numbers = #tpu.dot_dimension_numbers<[1], [1], [0], [0], [0, 0, 1, 0], [], []>} : vector<8x32xf32>, vector<8x32xf32>, vector<8x8xf32> -> vector<8x8xf32>
    %cst_34 = arith.constant dense<0xFF800000> : vector<8xf32>
    %61 = vector.multi_reduction <maximumf>, %60, %cst_34 [1] : vector<8x8xf32> to vector<8xf32>
    %62 = vector.shape_cast %61 : vector<8xf32> to vector<8x1xf32>
    %63 = vector.broadcast %62 : vector<8x1xf32> to vector<8x8xf32>
    %64 = arith.subf %60, %63 : vector<8x8xf32>
    %65 = math.exp %64 : vector<8x8xf32>
    %cst_35 = arith.constant dense<0.000000e+00> : vector<8xf32>
    %66 = vector.multi_reduction <add>, %65, %cst_35 [1] : vector<8x8xf32> to vector<8xf32>
    %67 = vector.shape_cast %66 : vector<8xf32> to vector<8x1xf32>
    %68 = tpu.reciprocal %67 {approx = true} : vector<8x1xf32> -> vector<8x1xf32>
    %69 = vector.broadcast %68 : vector<8x1xf32> to vector<8x8xf32>
    %70 = arith.mulf %65, %69 : vector<8x8xf32>
    %cst_36 = arith.constant dense<0.000000e+00> : vector<8x32xf32>
    %71 = tpu.matmul %70, %59, %cst_36 {dimension_numbers = #tpu.dot_dimension_numbers<[1], [0], [0], [1], [0, 0, 1, 1], [], []>} : vector<8x8xf32>, vector<8x32xf32>, vector<8x32xf32> -> vector<8x32xf32>
    %72 = tpu.concatenate %26, %41, %56, %71 in 1 : vector<8x32xf32>, vector<8x32xf32>, vector<8x32xf32>, vector<8x32xf32> -> vector<8x128xf32>
    %c0_37 = arith.constant 0 : index
    %c0_38 = arith.constant 0 : index
    %73 = vector.load %arg10[%c0_37, %c0_38] : memref<128x128xf32, #tpu.memory_space<vmem>>, vector<128x128xf32>
    %cst_39 = arith.constant dense<0.000000e+00> : vector<8x128xf32>
    %74 = tpu.matmul %72, %73, %cst_39 {dimension_numbers = #tpu.dot_dimension_numbers<[1], [0], [0], [1], [0, 0, 1, 1], [], []>} : vector<8x128xf32>, vector<128x128xf32>, vector<8x128xf32> -> vector<8x128xf32>
    %c0_40 = arith.constant 0 : index
    %c0_41 = arith.constant 0 : index
    %75 = vector.load %arg11[%c0_40, %c0_41] : memref<1x128xf32, #tpu.memory_space<vmem>>, vector<1x128xf32>
    %76 = vector.broadcast %75 : vector<1x128xf32> to vector<8x128xf32>
    %77 = arith.addf %74, %76 : vector<8x128xf32>
    %78 = arith.addf %4, %77 : vector<8x128xf32>
    %cst_42 = arith.constant dense<0.000000e+00> : vector<8xf32>
    %79 = vector.multi_reduction <add>, %78, %cst_42 [1] : vector<8x128xf32> to vector<8xf32>
    %80 = vector.shape_cast %79 : vector<8xf32> to vector<8x1xf32>
    %cst_43 = arith.constant 1.280000e+02 : f32
    %81 = vector.broadcast %cst_43 : f32 to vector<8x1xf32>
    %82 = arith.divf %80, %81 : vector<8x1xf32>
    %83 = vector.broadcast %82 : vector<8x1xf32> to vector<8x128xf32>
    %84 = arith.subf %78, %83 : vector<8x128xf32>
    %85 = arith.mulf %84, %84 : vector<8x128xf32>
    %cst_44 = arith.constant dense<0.000000e+00> : vector<8xf32>
    %86 = vector.multi_reduction <add>, %85, %cst_44 [1] : vector<8x128xf32> to vector<8xf32>
    %87 = vector.shape_cast %86 : vector<8xf32> to vector<8x1xf32>
    %cst_45 = arith.constant 1.280000e+02 : f32
    %88 = vector.broadcast %cst_45 : f32 to vector<8x1xf32>
    %89 = arith.divf %87, %88 : vector<8x1xf32>
    %cst_46 = arith.constant 9.99999974E-6 : f32
    %90 = vector.broadcast %cst_46 : f32 to vector<8x1xf32>
    %91 = arith.addf %89, %90 : vector<8x1xf32>
    %92 = math.rsqrt %91 : vector<8x1xf32>
    %93 = vector.broadcast %92 : vector<8x1xf32> to vector<8x128xf32>
    %94 = arith.mulf %84, %93 : vector<8x128xf32>
    %c0_47 = arith.constant 0 : index
    %c0_48 = arith.constant 0 : index
    %95 = vector.load %arg12[%c0_47, %c0_48] : memref<1x128xf32, #tpu.memory_space<vmem>>, vector<1x128xf32>
    %96 = vector.broadcast %95 : vector<1x128xf32> to vector<8x128xf32>
    %97 = arith.mulf %94, %96 : vector<8x128xf32>
    %c0_49 = arith.constant 0 : index
    %c0_50 = arith.constant 0 : index
    %98 = vector.load %arg13[%c0_49, %c0_50] : memref<1x128xf32, #tpu.memory_space<vmem>>, vector<1x128xf32>
    %99 = vector.broadcast %98 : vector<1x128xf32> to vector<8x128xf32>
    %100 = arith.addf %97, %99 : vector<8x128xf32>
    %c0_51 = arith.constant 0 : index
    %c0_52 = arith.constant 0 : index
    %c0_53 = arith.constant 0 : index
    %101 = vector.load %arg14[%c0_51, %c0_52, %c0_53] : memref<1x8x128xf32, #tpu.memory_space<vmem>>, vector<1x8x128xf32>
    %102 = vector.shape_cast %101 : vector<1x8x128xf32> to vector<8x128xf32>
    %103 = vector.shape_cast %100 : vector<8x128xf32> to vector<1x8x128xf32>
    tpu.vector_store %arg14[%c0_51, %c0_52, %c0_53], %103 {strides = array<i32>} : memref<1x8x128xf32, #tpu.memory_space<vmem>>, vector<1x8x128xf32>,
    return
  }
  func.func @transform_0(%arg0: i32, %arg1: i32) -> (i32, i32, i32) {
    %c0_i32 = arith.constant 0 : i32
    %c0_i32_0 = arith.constant 0 : i32
    return %arg0, %arg1, %c0_i32 : i32, i32, i32
  }
  func.func @transform_1(%arg0: i32, %arg1: i32) -> (i32, i32, i32) {
    %c0_i32 = arith.constant 0 : i32
    %c0_i32_0 = arith.constant 0 : i32
    %c0_i32_1 = arith.constant 0 : i32
    return %arg0, %c0_i32, %c0_i32_0 : i32, i32, i32
  }
  func.func @transform_2(%arg0: i32, %arg1: i32) -> (i32, i32) {
    %c0_i32 = arith.constant 0 : i32
    %c0_i32_0 = arith.constant 0 : i32
    %c0_i32_1 = arith.constant 0 : i32
    return %c0_i32, %c0_i32_0 : i32, i32
  }
  func.func @transform_3(%arg0: i32, %arg1: i32) -> (i32, i32) {
    %c0_i32 = arith.constant 0 : i32
    %c0_i32_0 = arith.constant 0 : i32
    %c0_i32_1 = arith.constant 0 : i32
    return %c0_i32, %c0_i32_0 : i32, i32
  }
  func.func @transform_4(%arg0: i32, %arg1: i32) -> (i32, i32) {
    %c0_i32 = arith.constant 0 : i32
    %c0_i32_0 = arith.constant 0 : i32
    %c0_i32_1 = arith.constant 0 : i32
    return %c0_i32, %c0_i32_0 : i32, i32
  }
  func.func @transform_5(%arg0: i32, %arg1: i32) -> (i32, i32) {
    %c0_i32 = arith.constant 0 : i32
    %c0_i32_0 = arith.constant 0 : i32
    %c0_i32_1 = arith.constant 0 : i32
    return %c0_i32, %c0_i32_0 : i32, i32
  }
  func.func @transform_6(%arg0: i32, %arg1: i32) -> (i32, i32) {
    %c0_i32 = arith.constant 0 : i32
    %c0_i32_0 = arith.constant 0 : i32
    %c0_i32_1 = arith.constant 0 : i32
    return %c0_i32, %c0_i32_0 : i32, i32
  }
  func.func @transform_7(%arg0: i32, %arg1: i32) -> (i32, i32) {
    %c0_i32 = arith.constant 0 : i32
    %c0_i32_0 = arith.constant 0 : i32
    %c0_i32_1 = arith.constant 0 : i32
    return %c0_i32, %c0_i32_0 : i32, i32
  }
  func.func @transform_8(%arg0: i32, %arg1: i32) -> (i32, i32) {
    %c0_i32 = arith.constant 0 : i32
    %c0_i32_0 = arith.constant 0 : i32
    %c0_i32_1 = arith.constant 0 : i32
    return %c0_i32, %c0_i32_0 : i32, i32
  }
  func.func @transform_9(%arg0: i32, %arg1: i32) -> (i32, i32) {
    %c0_i32 = arith.constant 0 : i32
    %c0_i32_0 = arith.constant 0 : i32
    %c0_i32_1 = arith.constant 0 : i32
    return %c0_i32, %c0_i32_0 : i32, i32
  }
  func.func @transform_10(%arg0: i32, %arg1: i32) -> (i32, i32) {
    %c0_i32 = arith.constant 0 : i32
    %c0_i32_0 = arith.constant 0 : i32
    %c0_i32_1 = arith.constant 0 : i32
    return %c0_i32, %c0_i32_0 : i32, i32
  }
  func.func @transform_11(%arg0: i32, %arg1: i32) -> (i32, i32) {
    %c0_i32 = arith.constant 0 : i32
    %c0_i32_0 = arith.constant 0 : i32
    %c0_i32_1 = arith.constant 0 : i32
    return %c0_i32, %c0_i32_0 : i32, i32
  }
  func.func @transform_12(%arg0: i32, %arg1: i32) -> (i32, i32, i32) {
    %c0_i32 = arith.constant 0 : i32
    %c0_i32_0 = arith.constant 0 : i32
    return %arg0, %arg1, %c0_i32 : i32, i32, i32
  }
}

</mosaic_0001>

<llo_original>
// kernel: tpu_custom_call.1
$region0: #{tpu_custom_call.1}
  #allocation0 [shape = 'u32[]', space=smem, size = 0x4, offset = 0x4, fixed_abs, tag = 'smem constant byte address 0x4 - core index']
  #allocation1 [shape = 'u32[144,128]{1,0:T(1,128)}', space=vmem, size = 0x12000, scoped, tag = 'internal scratch']
  #allocation2 [shape = 'f32[8,128]{1,0:T(8,128)}', space=vmem, size = 0x1000, scoped, tag = 'scratch operand']
  #allocation3 [shape = 'f32[8,128]{1,0:T(8,128)}', space=vmem, size = 0x1000, scoped, tag = 'scratch operand']
  %s0 = inlined_call_operand.hbm [shape: f32[2,8,128], index: 0, kind: input, shape index: {}]
  %s1 = inlined_call_operand.hbm [shape: f32[2,8,128], index: 1, kind: input, shape index: {}]
  %s2 = inlined_call_operand.hbm [shape: f32[128,128], index: 2, kind: input, shape index: {}]
  %s3 = inlined_call_operand.hbm [shape: f32[1,128], index: 3, kind: input, shape index: {}]
  %s4 = inlined_call_operand.hbm [shape: f32[128,128], index: 4, kind: input, shape index: {}]
  %s5 = inlined_call_operand.hbm [shape: f32[1,128], index: 5, kind: input, shape index: {}]
  %s6 = inlined_call_operand.hbm [shape: f32[128,128], index: 6, kind: input, shape index: {}]
  %s7 = inlined_call_operand.hbm [shape: f32[1,128], index: 7, kind: input, shape index: {}]
  %s8 = inlined_call_operand.hbm [shape: f32[128,128], index: 8, kind: input, shape index: {}]
  %s9 = inlined_call_operand.hbm [shape: f32[1,128], index: 9, kind: input, shape index: {}]
  %s10 = inlined_call_operand.hbm [shape: f32[1,128], index: 10, kind: input, shape index: {}]
  %s11 = inlined_call_operand.hbm [shape: f32[1,128], index: 11, kind: input, shape index: {}]
  %s12 = inlined_call_operand.hbm [shape: f32[2,8,128], index: 12, kind: output, shape index: {}]
  %s13 = sld [smem:[#allocation0]]
  $region133: #{tpu_custom_call.1} parent=0
    _
  %s15 = ssub.s32 1, %s13
  %s16 = scalar_select 0, %s15, %s13
  $region1: #{tpu_custom_call.1} parent=0
    #allocation4 [shape = 'u8[8192]{0}', space=vmem, size = 0x2000, scoped, tag = 'input window, operand 0']
    #allocation5 [shape = 's32[2]{0}', space=sflag, size = 0x8, scoped, tag = 'scoped memory for tpu_custom_call.1']
    #allocation6 [shape = 's32[2]{0}', space=sflag, size = 0x8, scoped, tag = 'scoped memory for tpu_custom_call.1']
    #allocation7 [shape = 'u8[8192]{0}', space=vmem, size = 0x2000, scoped, tag = 'input window, operand 1']
    #allocation8 [shape = 's32[2]{0}', space=sflag, size = 0x8, scoped, tag = 'scoped memory for tpu_custom_call.1']
    #allocation9 [shape = 'u8[65536]{0}', space=vmem, size = 0x10000, scoped, tag = 'input window, operand 2, single buffered']
    #allocation10 [shape = 'u8[512]{0}', space=vmem, size = 0x400, scoped, tag = 'input window, operand 3, single buffered']
    #allocation11 [shape = 's32[1]{0}', space=sflag, size = 0x4, scoped, tag = 'scoped memory for tpu_custom_call.1']
    #allocation12 [shape = 'u8[65536]{0}', space=vmem, size = 0x10000, scoped, tag = 'input window, operand 4, single buffered']
    #allocation13 [shape = 'u8[512]{0}', space=vmem, size = 0x400, scoped, tag = 'input window, operand 5, single buffered']
    #allocation14 [shape = 's32[1]{0}', space=sflag, size = 0x4, scoped, tag = 'scoped memory for tpu_custom_call.1']
    #allocation15 [shape = 'u8[65536]{0}', space=vmem, size = 0x10000, scoped, tag = 'input window, operand 6, single buffered']
    #allocation16 [shape = 'u8[512]{0}', space=vmem, size = 0x400, scoped, tag = 'input window, operand 7, single buffered']
    #allocation17 [shape = 's32[1]{0}', space=sflag, size = 0x4, scoped, tag = 'scoped memory for tpu_custom_call.1']
    #allocation18 [shape = 'u8[65536]{0}', space=vmem, size = 0x10000, scoped, tag = 'input window, operand 8, single buffered']
    #allocation19 [shape = 'u8[512]{0}', space=vmem, size = 0x400, scoped, tag = 'input window, operand 9, single buffered']
    #allocation20 [shape = 's32[1]{0}', space=sflag, size = 0x4, scoped, tag = 'scoped memory for tpu_custom_call.1']
    #allocation21 [shape = 'u8[512]{0}', space=vmem, size = 0x400, scoped, tag = 'input window, operand 10, single buffered']
    #allocation22 [shape = 'u8[512]{0}', space=vmem, size = 0x400, scoped, tag = 'input window, operand 11, single buffered']
    #allocation23 [shape = 's32[1]{0}', space=sflag, size = 0x4, scoped, tag = 'scoped memory for tpu_custom_call.1']
    #allocation24 [shape = 'u8[8192]{0}', space=vmem, size = 0x2000, scoped, tag = 'output window, operand 0']
    %17 = vsyncpa [#allocation5], 0
    %s18 = scalar_lea.sflag [#allocation5], 1
    %19 = vsyncpa %s18, 0
    %20 = vsyncpa [#allocation8], 0
    %s21 = scalar_lea.sflag [#allocation8], 1
    %22 = vsyncpa %s21, 0
    %23 = vsyncpa [#allocation11], 0
    %24 = vsyncpa [#allocation14], 0
    %25 = vsyncpa [#allocation17], 0
    %26 = vsyncpa [#allocation20], 0
    %27 = vsyncpa [#allocation23], 0
    %28 = vsyncpa [#allocation6], 0
    %s29 = scalar_lea.sflag [#allocation6], 1
    %30 = vsyncpa %s29, 0
    loop: start=0, step=1, limit=4
    $region2: #{tpu_custom_call.1} parent=1 // loop_pre_header
      _
    $region3: #{tpu_custom_call.1} parent=1 // loop_header
      %s32 = sphi 0, %s36
      %p33 = scmp.ge.s32.totalorder %s32, 4
      %s39 = sphi 0, %s51
      %s40 = sphi 0, %s47
      %s41 = sphi 0, %s39
      %s42 = sphi 0, %s40
      %s43 = sphi 0, %s41
      %s44 = sphi 0, %s42
      %s56 = sphi 0, %s58
      %s59 = sphi 0, %s56
      %s60 = sphi 0, %s59
      %s76 = sphi 0, %s60
      %s82 = sphi 0, %s84
      %s85 = sphi 0, %s82
      %s86 = sphi 0, %s85
      %s102 = sphi 0, %s86
      %s106 = sphi 0, %s106
      %s108 = sphi 0, %s106
      %s109 = sphi 0, %s108
      %s123 = sphi 0, %s109
      %s127 = sphi 0, %s127
      %s129 = sphi 0, %s127
      %s130 = sphi 0, %s129
      %s144 = sphi 0, %s130
      %s148 = sphi 0, %s148
      %s150 = sphi 0, %s148
      %s151 = sphi 0, %s150
      %s165 = sphi 0, %s151
      %s169 = sphi 0, %s169
      %s171 = sphi 0, %s169
      %s172 = sphi 0, %s171
      %s186 = sphi 0, %s172
      %s190 = sphi 0, %s190
      %s192 = sphi 0, %s190
      %s193 = sphi 0, %s192
      %s207 = sphi 0, %s193
      %s211 = sphi 0, %s211
      %s213 = sphi 0, %s211
      %s214 = sphi 0, %s213
      %s228 = sphi 0, %s214
      %s232 = sphi 0, %s232
      %s234 = sphi 0, %s232
      %s235 = sphi 0, %s234
      %s249 = sphi 0, %s235
      %s253 = sphi 0, %s253
      %s255 = sphi 0, %s253
      %s256 = sphi 0, %s255
      %s270 = sphi 0, %s256
      %s274 = sphi 0, %s274
      %s276 = sphi 0, %s274
      %s277 = sphi 0, %s276
      %s291 = sphi 0, %s277
      %s295 = sphi 0, %s295
      %s297 = sphi 0, %s295
      %s298 = sphi 0, %s297
      %s312 = sphi 0, %s298
      %s320 = sphi 0, %s322
      %s323 = sphi 0, %s320
      %s324 = sphi 0, %s323
      %s340 = sphi 0, %s324
    $region4: #{tpu_custom_call.1} parent=1 // loop_header_branch
      %35 = sbr.rel (%p33) target = $region8
    $region5: #{tpu_custom_call.1} parent=1 // loop_body
      %s37 = ssub.s32 %s32, 1
      %s38 = ssub.s32 %s32, 2
      %s45 = sadd.s32 1, %s40
      %p46 = scmp.ge.s32.totalorder %s45, 1
      %s47 = scalar_select %p46, 0, %s45
      %s48 = sadd.s32 1, %s39
      %s49 = scalar_select %p46, %s48, %s39
      %p50 = scmp.ge.s32.totalorder %s49, 2
      %s51 = scalar_select %p50, 0, %s49
      %s52 = ssub.s32 %s39, %s51
      %s53 = ssub.s32 %s40, %s47
      %s54 = sor.u32 %s52, %s53
      %p55 = scmp.eq.s32.totalorder %s54, 0
      %s57 = sadd.s32 %s56, 1
      %s58 = scalar_select %p55, %s56, %s57
      %p61 = pneg %p55
      %p62 = scmp.eq.s32.totalorder %s32, 1
      %p63 = por %p61, %p62
      %p64 = scmp.ne.s32.totalorder %s56, %s59
      %p65 = scmp.eq.s32.totalorder %s32, 0
      %p66 = por %p64, %p65
      %p67 = scmp.ne.s32.totalorder %s56, %s59
      %p68 = scmp.eq.s32.totalorder %s37, 1
      %p69 = por %p67, %p68
      %p70 = scmp.ne.s32.totalorder %s59, %s60
      %p71 = scmp.eq.s32.totalorder %s37, 0
      %p72 = por %p70, %p71
      %p73 = scmp.ne.s32.totalorder %s59, %s60
      %p74 = scmp.eq.s32.totalorder %s38, 1
      %p75 = por %p73, %p74
      %p77 = scmp.ne.s32.totalorder %s60, %s76
      %p78 = scmp.eq.s32.totalorder %s38, 0
      %p79 = por %p77, %p78
      %s80 = ssub.s32 %s39, %s51
      %p81 = scmp.eq.s32.totalorder %s80, 0
      %s83 = sadd.s32 %s82, 1
      %s84 = scalar_select %p81, %s82, %s83
      %p87 = pneg %p81
      %p88 = scmp.eq.s32.totalorder %s32, 1
      %p89 = por %p87, %p88
      %p90 = scmp.ne.s32.totalorder %s82, %s85
      %p91 = scmp.eq.s32.totalorder %s32, 0
      %p92 = por %p90, %p91
      %p93 = scmp.ne.s32.totalorder %s82, %s85
      %p94 = scmp.eq.s32.totalorder %s37, 1
      %p95 = por %p93, %p94
      %p96 = scmp.ne.s32.totalorder %s85, %s86
      %p97 = scmp.eq.s32.totalorder %s37, 0
      %p98 = por %p96, %p97
      %p99 = scmp.ne.s32.totalorder %s85, %s86
      %p100 = scmp.eq.s32.totalorder %s38, 1
      %p101 = por %p99, %p100
      %p103 = scmp.ne.s32.totalorder %s86, %s102
      %p104 = scmp.eq.s32.totalorder %s38, 0
      %p105 = por %p103, %p104
      %s107 = sadd.s32 %s106, 1
      %p110 = scmp.eq.s32.totalorder %s32, 1
      %p111 = scmp.ne.s32.totalorder %s106, %s108
      %p112 = scmp.eq.s32.totalorder %s32, 0
      %p113 = por %p111, %p112
      %p114 = scmp.ne.s32.totalorder %s106, %s108
      %p115 = scmp.eq.s32.totalorder %s37, 1
      %p116 = por %p114, %p115
      %p117 = scmp.ne.s32.totalorder %s108, %s109
      %p118 = scmp.eq.s32.totalorder %s37, 0
      %p119 = por %p117, %p118
      %p120 = scmp.ne.s32.totalorder %s108, %s109
      %p121 = scmp.eq.s32.totalorder %s38, 1
      %p122 = por %p120, %p121
      %p124 = scmp.ne.s32.totalorder %s109, %s123
      %p125 = scmp.eq.s32.totalorder %s38, 0
      %p126 = por %p124, %p125
      %s128 = sadd.s32 %s127, 1
      %p131 = scmp.eq.s32.totalorder %s32, 1
      %p132 = scmp.ne.s32.totalorder %s127, %s129
      %p133 = scmp.eq.s32.totalorder %s32, 0
      %p134 = por %p132, %p133
      %p135 = scmp.ne.s32.totalorder %s127, %s129
      %p136 = scmp.eq.s32.totalorder %s37, 1
      %p137 = por %p135, %p136
      %p138 = scmp.ne.s32.totalorder %s129, %s130
      %p139 = scmp.eq.s32.totalorder %s37, 0
      %p140 = por %p138, %p139
      %p141 = scmp.ne.s32.totalorder %s129, %s130
      %p142 = scmp.eq.s32.totalorder %s38, 1
      %p143 = por %p141, %p142
      %p145 = scmp.ne.s32.totalorder %s130, %s144
      %p146 = scmp.eq.s32.totalorder %s38, 0
      %p147 = por %p145, %p146
      %s149 = sadd.s32 %s148, 1
      %p152 = scmp.eq.s32.totalorder %s32, 1
      %p153 = scmp.ne.s32.totalorder %s148, %s150
      %p154 = scmp.eq.s32.totalorder %s32, 0
      %p155 = por %p153, %p154
      %p156 = scmp.ne.s32.totalorder %s148, %s150
      %p157 = scmp.eq.s32.totalorder %s37, 1
      %p158 = por %p156, %p157
      %p159 = scmp.ne.s32.totalorder %s150, %s151
      %p160 = scmp.eq.s32.totalorder %s37, 0
      %p161 = por %p159, %p160
      %p162 = scmp.ne.s32.totalorder %s150, %s151
      %p163 = scmp.eq.s32.totalorder %s38, 1
      %p164 = por %p162, %p163
      %p166 = scmp.ne.s32.totalorder %s151, %s165
      %p167 = scmp.eq.s32.totalorder %s38, 0
      %p168 = por %p166, %p167
      %s170 = sadd.s32 %s169, 1
      %p173 = scmp.eq.s32.totalorder %s32, 1
      %p174 = scmp.ne.s32.totalorder %s169, %s171
      %p175 = scmp.eq.s32.totalorder %s32, 0
      %p176 = por %p174, %p175
      %p177 = scmp.ne.s32.totalorder %s169, %s171
      %p178 = scmp.eq.s32.totalorder %s37, 1
      %p179 = por %p177, %p178
      %p180 = scmp.ne.s32.totalorder %s171, %s172
      %p181 = scmp.eq.s32.totalorder %s37, 0
      %p182 = por %p180, %p181
      %p183 = scmp.ne.s32.totalorder %s171, %s172
      %p184 = scmp.eq.s32.totalorder %s38, 1
      %p185 = por %p183, %p184
      %p187 = scmp.ne.s32.totalorder %s172, %s186
      %p188 = scmp.eq.s32.totalorder %s38, 0
      %p189 = por %p187, %p188
      %s191 = sadd.s32 %s190, 1
      %p194 = scmp.eq.s32.totalorder %s32, 1
      %p195 = scmp.ne.s32.totalorder %s190, %s192
      %p196 = scmp.eq.s32.totalorder %s32, 0
      %p197 = por %p195, %p196
      %p198 = scmp.ne.s32.totalorder %s190, %s192
      %p199 = scmp.eq.s32.totalorder %s37, 1
      %p200 = por %p198, %p199
      %p201 = scmp.ne.s32.totalorder %s192, %s193
      %p202 = scmp.eq.s32.totalorder %s37, 0
      %p203 = por %p201, %p202
      %p204 = scmp.ne.s32.totalorder %s192, %s193
      %p205 = scmp.eq.s32.totalorder %s38, 1
      %p206 = por %p204, %p205
      %p208 = scmp.ne.s32.totalorder %s193, %s207
      %p209 = scmp.eq.s32.totalorder %s38, 0
      %p210 = por %p208, %p209
      %s212 = sadd.s32 %s211, 1
      %p215 = scmp.eq.s32.totalorder %s32, 1
      %p216 = scmp.ne.s32.totalorder %s211, %s213
      %p217 = scmp.eq.s32.totalorder %s32, 0
      %p218 = por %p216, %p217
      %p219 = scmp.ne.s32.totalorder %s211, %s213
      %p220 = scmp.eq.s32.totalorder %s37, 1
      %p221 = por %p219, %p220
      %p222 = scmp.ne.s32.totalorder %s213, %s214
      %p223 = scmp.eq.s32.totalorder %s37, 0
      %p224 = por %p222, %p223
      %p225 = scmp.ne.s32.totalorder %s213, %s214
      %p226 = scmp.eq.s32.totalorder %s38, 1
      %p227 = por %p225, %p226
      %p229 = scmp.ne.s32.totalorder %s214, %s228
      %p230 = scmp.eq.s32.totalorder %s38, 0
      %p231 = por %p229, %p230
      %s233 = sadd.s32 %s232, 1
      %p236 = scmp.eq.s32.totalorder %s32, 1
      %p237 = scmp.ne.s32.totalorder %s232, %s234
      %p238 = scmp.eq.s32.totalorder %s32, 0
      %p239 = por %p237, %p238
      %p240 = scmp.ne.s32.totalorder %s232, %s234
      %p241 = scmp.eq.s32.totalorder %s37, 1
      %p242 = por %p240, %p241
      %p243 = scmp.ne.s32.totalorder %s234, %s235
      %p244 = scmp.eq.s32.totalorder %s37, 0
      %p245 = por %p243, %p244
      %p246 = scmp.ne.s32.totalorder %s234, %s235
      %p247 = scmp.eq.s32.totalorder %s38, 1
      %p248 = por %p246, %p247
      %p250 = scmp.ne.s32.totalorder %s235, %s249
      %p251 = scmp.eq.s32.totalorder %s38, 0
      %p252 = por %p250, %p251
      %s254 = sadd.s32 %s253, 1
      %p257 = scmp.eq.s32.totalorder %s32, 1
      %p258 = scmp.ne.s32.totalorder %s253, %s255
      %p259 = scmp.eq.s32.totalorder %s32, 0
      %p260 = por %p258, %p259
      %p261 = scmp.ne.s32.totalorder %s253, %s255
      %p262 = scmp.eq.s32.totalorder %s37, 1
      %p263 = por %p261, %p262
      %p264 = scmp.ne.s32.totalorder %s255, %s256
      %p265 = scmp.eq.s32.totalorder %s37, 0
      %p266 = por %p264, %p265
      %p267 = scmp.ne.s32.totalorder %s255, %s256
      %p268 = scmp.eq.s32.totalorder %s38, 1
      %p269 = por %p267, %p268
      %p271 = scmp.ne.s32.totalorder %s256, %s270
      %p272 = scmp.eq.s32.totalorder %s38, 0
      %p273 = por %p271, %p272
      %s275 = sadd.s32 %s274, 1
      %p278 = scmp.eq.s32.totalorder %s32, 1
      %p279 = scmp.ne.s32.totalorder %s274, %s276
      %p280 = scmp.eq.s32.totalorder %s32, 0
      %p281 = por %p279, %p280
      %p282 = scmp.ne.s32.totalorder %s274, %s276
      %p283 = scmp.eq.s32.totalorder %s37, 1
      %p284 = por %p282, %p283
      %p285 = scmp.ne.s32.totalorder %s276, %s277
      %p286 = scmp.eq.s32.totalorder %s37, 0
      %p287 = por %p285, %p286
      %p288 = scmp.ne.s32.totalorder %s276, %s277
      %p289 = scmp.eq.s32.totalorder %s38, 1
      %p290 = por %p288, %p289
      %p292 = scmp.ne.s32.totalorder %s277, %s291
      %p293 = scmp.eq.s32.totalorder %s38, 0
      %p294 = por %p292, %p293
      %s296 = sadd.s32 %s295, 1
      %p299 = scmp.eq.s32.totalorder %s32, 1
      %p300 = scmp.ne.s32.totalorder %s295, %s297
      %p301 = scmp.eq.s32.totalorder %s32, 0
      %p302 = por %p300, %p301
      %p303 = scmp.ne.s32.totalorder %s295, %s297
      %p304 = scmp.eq.s32.totalorder %s37, 1
      %p305 = por %p303, %p304
      %p306 = scmp.ne.s32.totalorder %s297, %s298
      %p307 = scmp.eq.s32.totalorder %s37, 0
      %p308 = por %p306, %p307
      %p309 = scmp.ne.s32.totalorder %s297, %s298
      %p310 = scmp.eq.s32.totalorder %s38, 1
      %p311 = por %p309, %p310
      %p313 = scmp.ne.s32.totalorder %s298, %s312
      %p314 = scmp.eq.s32.totalorder %s38, 0
      %p315 = por %p313, %p314
      %s316 = ssub.s32 %s39, %s51
      %s317 = ssub.s32 %s40, %s47
      %s318 = sor.u32 %s316, %s317
      %p319 = scmp.eq.s32.totalorder %s318, 0
      %s321 = sadd.s32 %s320, 1
      %s322 = scalar_select %p319, %s320, %s321
      %p325 = pneg %p319
      %p326 = scmp.eq.s32.totalorder %s32, 1
      %p327 = por %p325, %p326
      %p328 = scmp.ne.s32.totalorder %s320, %s323
      %p329 = scmp.eq.s32.totalorder %s32, 0
      %p330 = por %p328, %p329
      %p331 = scmp.ne.s32.totalorder %s320, %s323
      %p332 = scmp.eq.s32.totalorder %s37, 1
      %p333 = por %p331, %p332
      %p334 = scmp.ne.s32.totalorder %s323, %s324
      %p335 = scmp.eq.s32.totalorder %s37, 0
      %p336 = por %p334, %p335
      %p337 = scmp.ne.s32.totalorder %s323, %s324
      %p338 = scmp.eq.s32.totalorder %s38, 1
      %p339 = por %p337, %p338
      %p341 = scmp.ne.s32.totalorder %s324, %s340
      %p342 = scmp.eq.s32.totalorder %s38, 0
      %p343 = por %p341, %p342
      %p344 = scmp.le.s32.totalorder 1, %s32
      %p345 = scmp.lt.s32.totalorder %s32, 3
      %p346 = pnand %p344, %p345
      %p347 = pneg %p346
      // Predicated region
      $region9: #{tpu_custom_call.1} parent=5 // pred_check
        _
      $region10: #{tpu_custom_call.1} parent=5 // pred_check_branch
        %349 = sbr.rel (%p346) target = $region12
      $region11: #{tpu_custom_call.1} parent=5 // pred_region
        %s350 = ssub.s32 %s32, 1
        // Predicated region
        $region13: #{tpu_custom_call.1} parent=11 // pred_check
          %p351 = pneg %p119
        $region14: #{tpu_custom_call.1} parent=11 // pred_check_branch
          %353 = sbr.rel (%p351) target = $region16
        $region15: #{tpu_custom_call.1} parent=11 // pred_region
          %s355 = ssub.s32 2048, 2048
          %356 = vsyncadd [#allocation8], %s355
          %s357 = sshll.u32 [#allocation9], 4
          %s358 = int_to_ptr.vmem [resolvable:$true] %s357
          %363 = dma.hbm_to_vmem [thread:$0]  %s2, 2048, %s358, [#allocation8], 128, 128, 8
        $region16: #{tpu_custom_call.1} parent=11 // pred_fallthru
          _
        // Predicated region
        $region17: #{tpu_custom_call.1} parent=11 // pred_check
          %p364 = pneg %p140
        $region18: #{tpu_custom_call.1} parent=11 // pred_check_branch
          %366 = sbr.rel (%p364) target = $region20
        $region19: #{tpu_custom_call.1} parent=11 // pred_region
          %s368 = ssub.s32 16, 16
          %369 = vsyncadd [#allocation11], %s368
          %s371 = sshll.u32 [#allocation10], 4
          %s372 = int_to_ptr.vmem [resolvable:$true] %s371
          %374 = dma.hbm_to_vmem [thread:$0]  %s3, 16, %s372, [#allocation11]
        $region20: #{tpu_custom_call.1} parent=11 // pred_fallthru
          _
        // Predicated region
        $region21: #{tpu_custom_call.1} parent=11 // pred_check
          %p375 = pneg %p161
        $region22: #{tpu_custom_call.1} parent=11 // pred_check_branch
          %377 = sbr.rel (%p375) target = $region24
        $region23: #{tpu_custom_call.1} parent=11 // pred_region
          %s379 = ssub.s32 2048, 2048
          %380 = vsyncadd [#allocation11], %s379
          %s381 = sshll.u32 [#allocation12], 4
          %s382 = int_to_ptr.vmem [resolvable:$true] %s381
          %387 = dma.hbm_to_vmem [thread:$0]  %s4, 2048, %s382, [#allocation11], 128, 128, 8
        $region24: #{tpu_custom_call.1} parent=11 // pred_fallthru
          _
        // Predicated region
        $region25: #{tpu_custom_call.1} parent=11 // pred_check
          %p388 = pneg %p182
        $region26: #{tpu_custom_call.1} parent=11 // pred_check_branch
          %390 = sbr.rel (%p388) target = $region28
        $region27: #{tpu_custom_call.1} parent=11 // pred_region
          %s392 = ssub.s32 16, 16
          %393 = vsyncadd [#allocation14], %s392
          %s395 = sshll.u32 [#allocation13], 4
          %s396 = int_to_ptr.vmem [resolvable:$true] %s395
          %398 = dma.hbm_to_vmem [thread:$0]  %s5, 16, %s396, [#allocation14]
        $region28: #{tpu_custom_call.1} parent=11 // pred_fallthru
          _
        // Predicated region
        $region29: #{tpu_custom_call.1} parent=11 // pred_check
          %p399 = pneg %p203
        $region30: #{tpu_custom_call.1} parent=11 // pred_check_branch
          %401 = sbr.rel (%p399) target = $region32
        $region31: #{tpu_custom_call.1} parent=11 // pred_region
          %s403 = ssub.s32 2048, 2048
          %404 = vsyncadd [#allocation14], %s403
          %s405 = sshll.u32 [#allocation15], 4
          %s406 = int_to_ptr.vmem [resolvable:$true] %s405
          %411 = dma.hbm_to_vmem [thread:$0]  %s6, 2048, %s406, [#allocation14], 128, 128, 8
        $region32: #{tpu_custom_call.1} parent=11 // pred_fallthru
          _
        // Predicated region
        $region33: #{tpu_custom_call.1} parent=11 // pred_check
          %p412 = pneg %p224
        $region34: #{tpu_custom_call.1} parent=11 // pred_check_branch
          %414 = sbr.rel (%p412) target = $region36
        $region35: #{tpu_custom_call.1} parent=11 // pred_region
          %s416 = ssub.s32 16, 16
          %417 = vsyncadd [#allocation17], %s416
          %s419 = sshll.u32 [#allocation16], 4
          %s420 = int_to_ptr.vmem [resolvable:$true] %s419
          %422 = dma.hbm_to_vmem [thread:$0]  %s7, 16, %s420, [#allocation17]
        $region36: #{tpu_custom_call.1} parent=11 // pred_fallthru
          _
        // Predicated region
        $region37: #{tpu_custom_call.1} parent=11 // pred_check
          %p423 = pneg %p245
        $region38: #{tpu_custom_call.1} parent=11 // pred_check_branch
          %425 = sbr.rel (%p423) target = $region40
        $region39: #{tpu_custom_call.1} parent=11 // pred_region
          %s427 = ssub.s32 2048, 2048
          %428 = vsyncadd [#allocation17], %s427
          %s429 = sshll.u32 [#allocation18], 4
          %s430 = int_to_ptr.vmem [resolvable:$true] %s429
          %435 = dma.hbm_to_vmem [thread:$0]  %s8, 2048, %s430, [#allocation17], 128, 128, 8
        $region40: #{tpu_custom_call.1} parent=11 // pred_fallthru
          _
        // Predicated region
        $region41: #{tpu_custom_call.1} parent=11 // pred_check
          %p436 = pneg %p266
        $region42: #{tpu_custom_call.1} parent=11 // pred_check_branch
          %438 = sbr.rel (%p436) target = $region44
        $region43: #{tpu_custom_call.1} parent=11 // pred_region
          %s440 = ssub.s32 16, 16
          %441 = vsyncadd [#allocation20], %s440
          %s443 = sshll.u32 [#allocation19], 4
          %s444 = int_to_ptr.vmem [resolvable:$true] %s443
          %446 = dma.hbm_to_vmem [thread:$0]  %s9, 16, %s444, [#allocation20]
        $region44: #{tpu_custom_call.1} parent=11 // pred_fallthru
          _
        // Predicated region
        $region45: #{tpu_custom_call.1} parent=11 // pred_check
          %p447 = pneg %p287
        $region46: #{tpu_custom_call.1} parent=11 // pred_check_branch
          %449 = sbr.rel (%p447) target = $region48
        $region47: #{tpu_custom_call.1} parent=11 // pred_region
          %s451 = ssub.s32 16, 16
          %452 = vsyncadd [#allocation20], %s451
          %s454 = sshll.u32 [#allocation21], 4
          %s455 = int_to_ptr.vmem [resolvable:$true] %s454
          %457 = dma.hbm_to_vmem [thread:$0]  %s10, 16, %s455, [#allocation20]
        $region48: #{tpu_custom_call.1} parent=11 // pred_fallthru
          _
        // Predicated region
        $region49: #{tpu_custom_call.1} parent=11 // pred_check
          %p458 = pneg %p308
        $region50: #{tpu_custom_call.1} parent=11 // pred_check_branch
          %460 = sbr.rel (%p458) target = $region52
        $region51: #{tpu_custom_call.1} parent=11 // pred_region
          %s462 = ssub.s32 16, 16
          %463 = vsyncadd [#allocation23], %s462
          %s465 = sshll.u32 [#allocation22], 4
          %s466 = int_to_ptr.vmem [resolvable:$true] %s465
          %468 = dma.hbm_to_vmem [thread:$0]  %s11, 16, %s466, [#allocation23]
        $region52: #{tpu_custom_call.1} parent=11 // pred_fallthru
          _
      $region12: #{tpu_custom_call.1} parent=5 // pred_fallthru
        _
      %p469 = scmp.lt.s32.totalorder %s32, 2
      // Predicated region
      $region53: #{tpu_custom_call.1} parent=5 // pred_check
        %p470 = pneg %p469
      $region54: #{tpu_custom_call.1} parent=5 // pred_check_branch
        %472 = sbr.rel (%p470) target = $region56
      $region55: #{tpu_custom_call.1} parent=5 // pred_region
        // Predicated region
        $region57: #{tpu_custom_call.1} parent=55 // pred_check
          %p473 = pneg %p66
        $region58: #{tpu_custom_call.1} parent=55 // pred_check_branch
          %475 = sbr.rel (%p473) target = $region60
        $region59: #{tpu_custom_call.1} parent=55 // pred_region
          %s476 = sand.u32 %s56, 1
          %s477 = scalar_lea.sflag [#allocation5], %s476
          %s478 = sand.u32 %s56, 1
          %s479 = smul.addr %s478, 8
          %s480 = scalar_lea.vmem [#allocation4], %s479
          %s482 = ssub.s32 128, 128
          %483 = vsyncadd %s477, %s482
          %s484 = sadd.s32 %s40, %s39
          %s485 = smul.addr %s484, 128
          %s486 = scalar_lea.hbm %s0, %s485
          %s488 = sshll.u32 %s480, 4
          %s489 = int_to_ptr.vmem [resolvable:$true] %s488
          %491 = dma.hbm_to_vmem [thread:$0]  %s486, 128, %s489, %s477
        $region60: #{tpu_custom_call.1} parent=55 // pred_fallthru
          _
        // Predicated region
        $region61: #{tpu_custom_call.1} parent=55 // pred_check
          %p492 = pneg %p92
        $region62: #{tpu_custom_call.1} parent=55 // pred_check_branch
          %494 = sbr.rel (%p492) target = $region64
        $region63: #{tpu_custom_call.1} parent=55 // pred_region
          %s495 = sand.u32 %s32, 1
          %s496 = scalar_lea.sflag [#allocation8], %s495
          %s497 = sand.u32 %s82, 1
          %s498 = smul.addr %s497, 8
          %s499 = scalar_lea.vmem [#allocation7], %s498
          %s501 = ssub.s32 128, 128
          %502 = vsyncadd %s496, %s501
          %s503 = smul.addr %s39, 128
          %s504 = scalar_lea.hbm %s1, %s503
          %s506 = sshll.u32 %s499, 4
          %s507 = int_to_ptr.vmem [resolvable:$true] %s506
          %509 = dma.hbm_to_vmem [thread:$0]  %s504, 128, %s507, %s496
        $region64: #{tpu_custom_call.1} parent=55 // pred_fallthru
          _
      $region56: #{tpu_custom_call.1} parent=5 // pred_fallthru
        _
      %p510 = scmp.le.s32.totalorder 1, %s32
      %p511 = scmp.lt.s32.totalorder %s32, 3
      %p512 = pnand %p510, %p511
      %p513 = pneg %p512
      // Predicated region
      $region65: #{tpu_custom_call.1} parent=5 // pred_check
        _
      $region66: #{tpu_custom_call.1} parent=5 // pred_check_branch
        %515 = sbr.rel (%p512) target = $region68
      $region67: #{tpu_custom_call.1} parent=5 // pred_region
        %s516 = ssub.s32 %s32, 1
        %s517 = sand.u32 %s59, 1
        %s518 = scalar_lea.sflag [#allocation5], %s517
        %s519 = sand.u32 %s59, 1
        %s520 = smul.addr %s519, 8
        %s521 = scalar_lea.vmem [#allocation4], %s520
        // Predicated region
        $region69: #{tpu_custom_call.1} parent=67 // pred_check
          %p522 = pneg %p72
        $region70: #{tpu_custom_call.1} parent=67 // pred_check_branch
          %524 = sbr.rel (%p522) target = $region72
        $region71: #{tpu_custom_call.1} parent=67 // pred_region
          %525 = dma.done %s518, 128
        $region72: #{tpu_custom_call.1} parent=67 // pred_fallthru
          _
        %s526 = sand.u32 %s37, 1
        %s527 = scalar_lea.sflag [#allocation8], %s526
        %s528 = sand.u32 %s85, 1
        %s529 = smul.addr %s528, 8
        %s530 = scalar_lea.vmem [#allocation7], %s529
        // Predicated region
        $region73: #{tpu_custom_call.1} parent=67 // pred_check
          %p531 = pneg %p98
        $region74: #{tpu_custom_call.1} parent=67 // pred_check_branch
          %533 = sbr.rel (%p531) target = $region76
        $region75: #{tpu_custom_call.1} parent=67 // pred_region
          %534 = dma.done %s527, 128
        $region76: #{tpu_custom_call.1} parent=67 // pred_fallthru
          _
        // Predicated region
        $region77: #{tpu_custom_call.1} parent=67 // pred_check
          %p535 = pneg %p119
        $region78: #{tpu_custom_call.1} parent=67 // pred_check_branch
          %537 = sbr.rel (%p535) target = $region80
        $region79: #{tpu_custom_call.1} parent=67 // pred_region
          %538 = dma.done [#allocation8], 2048
        $region80: #{tpu_custom_call.1} parent=67 // pred_fallthru
          _
        // Predicated region
        $region81: #{tpu_custom_call.1} parent=67 // pred_check
          %p539 = pneg %p140
        $region82: #{tpu_custom_call.1} parent=67 // pred_check_branch
          %541 = sbr.rel (%p539) target = $region84
        $region83: #{tpu_custom_call.1} parent=67 // pred_region
          %542 = dma.done [#allocation11], 16
        $region84: #{tpu_custom_call.1} parent=67 // pred_fallthru
          _
        // Predicated region
        $region85: #{tpu_custom_call.1} parent=67 // pred_check
          %p543 = pneg %p161
        $region86: #{tpu_custom_call.1} parent=67 // pred_check_branch
          %545 = sbr.rel (%p543) target = $region88
        $region87: #{tpu_custom_call.1} parent=67 // pred_region
          %546 = dma.done [#allocation11], 2048
        $region88: #{tpu_custom_call.1} parent=67 // pred_fallthru
          _
        // Predicated region
        $region89: #{tpu_custom_call.1} parent=67 // pred_check
          %p547 = pneg %p182
        $region90: #{tpu_custom_call.1} parent=67 // pred_check_branch
          %549 = sbr.rel (%p547) target = $region92
        $region91: #{tpu_custom_call.1} parent=67 // pred_region
          %550 = dma.done [#allocation14], 16
        $region92: #{tpu_custom_call.1} parent=67 // pred_fallthru
          _
        // Predicated region
        $region93: #{tpu_custom_call.1} parent=67 // pred_check
          %p551 = pneg %p203
        $region94: #{tpu_custom_call.1} parent=67 // pred_check_branch
          %553 = sbr.rel (%p551) target = $region96
        $region95: #{tpu_custom_call.1} parent=67 // pred_region
          %554 = dma.done [#allocation14], 2048
        $region96: #{tpu_custom_call.1} parent=67 // pred_fallthru
          _
        // Predicated region
        $region97: #{tpu_custom_call.1} parent=67 // pred_check
          %p555 = pneg %p224
        $region98: #{tpu_custom_call.1} parent=67 // pred_check_branch
          %557 = sbr.rel (%p555) target = $region100
        $region99: #{tpu_custom_call.1} parent=67 // pred_region
          %558 = dma.done [#allocation17], 16
        $region100: #{tpu_custom_call.1} parent=67 // pred_fallthru
          _
        // Predicated region
        $region101: #{tpu_custom_call.1} parent=67 // pred_check
          %p559 = pneg %p245
        $region102: #{tpu_custom_call.1} parent=67 // pred_check_branch
          %561 = sbr.rel (%p559) target = $region104
        $region103: #{tpu_custom_call.1} parent=67 // pred_region
          %562 = dma.done [#allocation17], 2048
        $region104: #{tpu_custom_call.1} parent=67 // pred_fallthru
          _
        // Predicated region
        $region105: #{tpu_custom_call.1} parent=67 // pred_check
          %p563 = pneg %p266
        $region106: #{tpu_custom_call.1} parent=67 // pred_check_branch
          %565 = sbr.rel (%p563) target = $region108
        $region107: #{tpu_custom_call.1} parent=67 // pred_region
          %566 = dma.done [#allocation20], 16
        $region108: #{tpu_custom_call.1} parent=67 // pred_fallthru
          _
        // Predicated region
        $region109: #{tpu_custom_call.1} parent=67 // pred_check
          %p567 = pneg %p287
        $region110: #{tpu_custom_call.1} parent=67 // pred_check_branch
          %569 = sbr.rel (%p567) target = $region112
        $region111: #{tpu_custom_call.1} parent=67 // pred_region
          %570 = dma.done [#allocation20], 16
        $region112: #{tpu_custom_call.1} parent=67 // pred_fallthru
          _
        // Predicated region
        $region113: #{tpu_custom_call.1} parent=67 // pred_check
          %p571 = pneg %p308
        $region114: #{tpu_custom_call.1} parent=67 // pred_check_branch
          %573 = sbr.rel (%p571) target = $region116
        $region115: #{tpu_custom_call.1} parent=67 // pred_region
          %574 = dma.done [#allocation23], 16
        $region116: #{tpu_custom_call.1} parent=67 // pred_fallthru
          _
        %s575 = sand.u32 %s59, 1
        %s576 = scalar_lea.sflag [#allocation5], %s575
        %s577 = sand.u32 %s59, 1
        %s578 = smul.addr %s577, 8
        %s579 = scalar_lea.vmem [#allocation4], %s578
        %p580 = pneg %p72
        %p581 = pneg %p69
        %s582 = sand.u32 %s37, 1
        %s583 = scalar_lea.sflag [#allocation8], %s582
        %s584 = sand.u32 %s85, 1
        %s585 = smul.addr %s584, 8
        %s586 = scalar_lea.vmem [#allocation7], %s585
        %p587 = pneg %p98
        %p588 = pneg %p95
        %p589 = pneg %p119
        %p590 = pneg %p116
        %p591 = pneg %p140
        %p592 = pneg %p137
        %p593 = pneg %p161
        %p594 = pneg %p158
        %p595 = pneg %p182
        %p596 = pneg %p179
        %p597 = pneg %p203
        %p598 = pneg %p200
        %p599 = pneg %p224
        %p600 = pneg %p221
        %p601 = pneg %p245
        %p602 = pneg %p242
        %p603 = pneg %p266
        %p604 = pneg %p263
        %p605 = pneg %p287
        %p606 = pneg %p284
        %p607 = pneg %p308
        %p608 = pneg %p305
        %p609 = pneg %p336
        %p610 = pneg %p333
        %s611 = sand.u32 %s323, 1
        %s612 = scalar_lea.sflag [#allocation6], %s611
        %s613 = sand.u32 %s323, 1
        %s614 = smul.addr %s613, 8
        %s615 = scalar_lea.vmem [#allocation24], %s614
        %p616 = scmp.eq.s32.totalorder %s42, 0
        // Predicated region
        $region117: #{tpu_custom_call.1} parent=67 // pred_check
          %p617 = pneg %p616
        $region118: #{tpu_custom_call.1} parent=67 // pred_check_branch
          %619 = sbr.rel (%p617) target = $region120
        $region119: #{tpu_custom_call.1} parent=67 // pred_region
          %v620 = vld [vmem:[%s530] sm:$0xff]
          %v621 = vld [vmem:[#allocation12] sm:$0xff]
          %v622 = vld [vmem:[#allocation12 + $0x8] sm:$0xff]
          %v623 = vld [vmem:[#allocation12 + $0x10] sm:$0xff]
          %v624 = vld [vmem:[#allocation12 + $0x18] sm:$0xff]
          %v625 = vld [vmem:[#allocation12 + $0x20] sm:$0xff]
          %v626 = vld [vmem:[#allocation12 + $0x28] sm:$0xff]
          %v627 = vld [vmem:[#allocation12 + $0x30] sm:$0xff]
          %v628 = vld [vmem:[#allocation12 + $0x38] sm:$0xff]
          %v629 = vld [vmem:[#allocation12 + $0x40] sm:$0xff]
          %v630 = vld [vmem:[#allocation12 + $0x48] sm:$0xff]
          %v631 = vld [vmem:[#allocation12 + $0x50] sm:$0xff]
          %v632 = vld [vmem:[#allocation12 + $0x58] sm:$0xff]
          %v633 = vld [vmem:[#allocation12 + $0x60] sm:$0xff]
          %v634 = vld [vmem:[#allocation12 + $0x68] sm:$0xff]
          %v635 = vld [vmem:[#allocation12 + $0x70] sm:$0xff]
          %v636 = vld [vmem:[#allocation12 + $0x78] sm:$0xff]
          %v637 = vld [vmem:[#allocation13] sm:$0x1]
          %v639 = vlaneseq
          %v640 = vshrl.u32 %v639, 7
          %v641 = vsub.s32 0, %v640
          %v642 = vrot.slane %v637, %v641
          %644 = vmatprep.subr.mxu0 0.0
          %645 = vmatpush1.msra.mxu0 %v621
          %646 = vmatprep.subr.mxu0 0.0
          %647 = vmatpush1.msra.mxu0 %v622
          %648 = vmatprep.subr.mxu0 0.0
          %649 = vmatpush1.msra.mxu0 %v623
          %650 = vmatprep.subr.mxu0 0.0
          %651 = vmatpush1.msra.mxu0 %v624
          %652 = vmatprep.subr.mxu0 0.0
          %653 = vmatpush1.msra.mxu0 %v625
          %654 = vmatprep.subr.mxu0 0.0
          %655 = vmatpush1.msra.mxu0 %v626
          %656 = vmatprep.subr.mxu0 0.0
          %657 = vmatpush1.msra.mxu0 %v627
          %658 = vmatprep.subr.mxu0 0.0
          %659 = vmatpush1.msra.mxu0 %v628
          %660 = vmatprep.subr.mxu0 0.0
          %661 = vmatpush1.msra.mxu0 %v629
          %662 = vmatprep.subr.mxu0 0.0
          %663 = vmatpush1.msra.mxu0 %v630
          %664 = vmatprep.subr.mxu0 0.0
          %665 = vmatpush1.msra.mxu0 %v631
          %666 = vmatprep.subr.mxu0 0.0
          %667 = vmatpush1.msra.mxu0 %v632
          %668 = vmatprep.subr.mxu0 0.0
          %669 = vmatpush1.msra.mxu0 %v633
          %670 = vmatprep.subr.mxu0 0.0
          %671 = vmatpush1.msra.mxu0 %v634
          %672 = vmatprep.subr.mxu0 0.0
          %673 = vmatpush1.msra.mxu0 %v635
          %674 = vmatprep.subr.mxu0 0.0
          %675 = vmatpush1.msra.mxu0 %v636
          %676 = vmatprep.subr.mxu0 0.0
          %677 = vmatpush1.msra.mxu0 0.0
          %678 = vmatprep.subr.mxu0 0.0
          %679 = vmatpush1.msra.mxu0 0.0
          %680 = vmatprep.subr.mxu0 0.0
          %681 = vmatpush1.msra.mxu0 0.0
          %682 = vmatprep.subr.mxu0 0.0
          %683 = vmatpush1.msra.mxu0 0.0
          %684 = vmatprep.subr.mxu0 0.0
          %685 = vmatpush1.msra.mxu0 0.0
          %686 = vmatprep.subr.mxu0 0.0
          %687 = vmatpush1.msra.mxu0 0.0
          %688 = vmatprep.subr.mxu0 0.0
          %689 = vmatpush1.msra.mxu0 0.0
          %690 = vmatprep.subr.mxu0 0.0
          %691 = vmatpush1.msra.mxu0 0.0
          %692 = vmatprep.subr.mxu0 0.0
          %693 = vmatpush1.msra.mxu0 0.0
          %694 = vmatprep.subr.mxu0 0.0
          %695 = vmatpush1.msra.mxu0 0.0
          %696 = vmatprep.subr.mxu0 0.0
          %697 = vmatpush1.msra.mxu0 0.0
          %698 = vmatprep.subr.mxu0 0.0
          %699 = vmatpush1.msra.mxu0 0.0
          %700 = vmatprep.subr.mxu0 0.0
          %701 = vmatpush1.msra.mxu0 0.0
          %702 = vmatprep.subr.mxu0 0.0
          %703 = vmatpush1.msra.mxu0 0.0
          %704 = vmatprep.subr.mxu0 0.0
          %705 = vmatpush1.msra.mxu0 0.0
          %706 = vmatprep.subr.mxu0 0.0
          %707 = vmatpush1.msra.mxu0 0.0
          %708 = vmatprep.mubr.f32.mxu0 0.0
          %709 = vmatmul.mubr.f32.gmra.mrb[0].mxu0 %v620
          %v710 = vpop.f32.mrb[0].mxu0
          %v711 = vadd.f32 %v642, %v710
          %v712 = vpop.f32.mrb[0].mxu0
          %713 = vdwg.mxu0
          %714 = vst [vmem:[#allocation2] sm:$0xff] %v711
          %v715 = vld [vmem:[#allocation15] sm:$0xff]
          %v716 = vld [vmem:[#allocation15 + $0x8] sm:$0xff]
          %v717 = vld [vmem:[#allocation15 + $0x10] sm:$0xff]
          %v718 = vld [vmem:[#allocation15 + $0x18] sm:$0xff]
          %v719 = vld [vmem:[#allocation15 + $0x20] sm:$0xff]
          %v720 = vld [vmem:[#allocation15 + $0x28] sm:$0xff]
          %v721 = vld [vmem:[#allocation15 + $0x30] sm:$0xff]
          %v722 = vld [vmem:[#allocation15 + $0x38] sm:$0xff]
          %v723 = vld [vmem:[#allocation15 + $0x40] sm:$0xff]
          %v724 = vld [vmem:[#allocation15 + $0x48] sm:$0xff]
          %v725 = vld [vmem:[#allocation15 + $0x50] sm:$0xff]
          %v726 = vld [vmem:[#allocation15 + $0x58] sm:$0xff]
          %v727 = vld [vmem:[#allocation15 + $0x60] sm:$0xff]
          %v728 = vld [vmem:[#allocation15 + $0x68] sm:$0xff]
          %v729 = vld [vmem:[#allocation15 + $0x70] sm:$0xff]
          %v730 = vld [vmem:[#allocation15 + $0x78] sm:$0xff]
          %v731 = vld [vmem:[#allocation16] sm:$0x1]
          %v733 = vlaneseq
          %v734 = vshrl.u32 %v733, 7
          %v735 = vsub.s32 0, %v734
          %v736 = vrot.slane %v731, %v735
          %738 = vmatprep.subr.mxu0 0.0
          %739 = vmatpush1.msra.mxu0 %v715
          %740 = vmatprep.subr.mxu0 0.0
          %741 = vmatpush1.msra.mxu0 %v716
          %742 = vmatprep.subr.mxu0 0.0
          %743 = vmatpush1.msra.mxu0 %v717
          %744 = vmatprep.subr.mxu0 0.0
          %745 = vmatpush1.msra.mxu0 %v718
          %746 = vmatprep.subr.mxu0 0.0
          %747 = vmatpush1.msra.mxu0 %v719
          %748 = vmatprep.subr.mxu0 0.0
          %749 = vmatpush1.msra.mxu0 %v720
          %750 = vmatprep.subr.mxu0 0.0
          %751 = vmatpush1.msra.mxu0 %v721
          %752 = vmatprep.subr.mxu0 0.0
          %753 = vmatpush1.msra.mxu0 %v722
          %754 = vmatprep.subr.mxu0 0.0
          %755 = vmatpush1.msra.mxu0 %v723
          %756 = vmatprep.subr.mxu0 0.0
          %757 = vmatpush1.msra.mxu0 %v724
          %758 = vmatprep.subr.mxu0 0.0
          %759 = vmatpush1.msra.mxu0 %v725
          %760 = vmatprep.subr.mxu0 0.0
          %761 = vmatpush1.msra.mxu0 %v726
          %762 = vmatprep.subr.mxu0 0.0
          %763 = vmatpush1.msra.mxu0 %v727
          %764 = vmatprep.subr.mxu0 0.0
          %765 = vmatpush1.msra.mxu0 %v728
          %766 = vmatprep.subr.mxu0 0.0
          %767 = vmatpush1.msra.mxu0 %v729
          %768 = vmatprep.subr.mxu0 0.0
          %769 = vmatpush1.msra.mxu0 %v730
          %770 = vmatprep.subr.mxu0 0.0
          %771 = vmatpush1.msra.mxu0 0.0
          %772 = vmatprep.subr.mxu0 0.0
          %773 = vmatpush1.msra.mxu0 0.0
          %774 = vmatprep.subr.mxu0 0.0
          %775 = vmatpush1.msra.mxu0 0.0
          %776 = vmatprep.subr.mxu0 0.0
          %777 = vmatpush1.msra.mxu0 0.0
          %778 = vmatprep.subr.mxu0 0.0
          %779 = vmatpush1.msra.mxu0 0.0
          %780 = vmatprep.subr.mxu0 0.0
          %781 = vmatpush1.msra.mxu0 0.0
          %782 = vmatprep.subr.mxu0 0.0
          %783 = vmatpush1.msra.mxu0 0.0
          %784 = vmatprep.subr.mxu0 0.0
          %785 = vmatpush1.msra.mxu0 0.0
          %786 = vmatprep.subr.mxu0 0.0
          %787 = vmatpush1.msra.mxu0 0.0
          %788 = vmatprep.subr.mxu0 0.0
          %789 = vmatpush1.msra.mxu0 0.0
          %790 = vmatprep.subr.mxu0 0.0
          %791 = vmatpush1.msra.mxu0 0.0
          %792 = vmatprep.subr.mxu0 0.0
          %793 = vmatpush1.msra.mxu0 0.0
          %794 = vmatprep.subr.mxu0 0.0
          %795 = vmatpush1.msra.mxu0 0.0
          %796 = vmatprep.subr.mxu0 0.0
          %797 = vmatpush1.msra.mxu0 0.0
          %798 = vmatprep.subr.mxu0 0.0
          %799 = vmatpush1.msra.mxu0 0.0
          %800 = vmatprep.subr.mxu0 0.0
          %801 = vmatpush1.msra.mxu0 0.0
          %802 = vmatprep.mubr.f32.mxu0 0.0
          %803 = vmatmul.mubr.f32.gmra.mrb[0].mxu0 %v620
          %v804 = vpop.f32.mrb[0].mxu0
          %v805 = vadd.f32 %v736, %v804
          %v806 = vpop.f32.mrb[0].mxu0
          %807 = vdwg.mxu0
          %808 = vst [vmem:[#allocation3] sm:$0xff] %v805
        $region120: #{tpu_custom_call.1} parent=67 // pred_fallthru
          _
        %v809 = vld [vmem:[%s521] sm:$0xff]
        %v810 = vld [vmem:[#allocation9] sm:$0xff]
        %v811 = vld [vmem:[#allocation9 + $0x8] sm:$0xff]
        %v812 = vld [vmem:[#allocation9 + $0x10] sm:$0xff]
        %v813 = vld [vmem:[#allocation9 + $0x18] sm:$0xff]
        %v814 = vld [vmem:[#allocation9 + $0x20] sm:$0xff]
        %v815 = vld [vmem:[#allocation9 + $0x28] sm:$0xff]
        %v816 = vld [vmem:[#allocation9 + $0x30] sm:$0xff]
        %v817 = vld [vmem:[#allocation9 + $0x38] sm:$0xff]
        %v818 = vld [vmem:[#allocation9 + $0x40] sm:$0xff]
        %v819 = vld [vmem:[#allocation9 + $0x48] sm:$0xff]
        %v820 = vld [vmem:[#allocation9 + $0x50] sm:$0xff]
        %v821 = vld [vmem:[#allocation9 + $0x58] sm:$0xff]
        %v822 = vld [vmem:[#allocation9 + $0x60] sm:$0xff]
        %v823 = vld [vmem:[#allocation9 + $0x68] sm:$0xff]
        %v824 = vld [vmem:[#allocation9 + $0x70] sm:$0xff]
        %v825 = vld [vmem:[#allocation9 + $0x78] sm:$0xff]
        %v826 = vld [vmem:[#allocation10] sm:$0x1]
        %v828 = vlaneseq
        %v829 = vshrl.u32 %v828, 7
        %v830 = vsub.s32 0, %v829
        %v831 = vrot.slane %v826, %v830
        %833 = vmatprep.subr.mxu0 0.0
        %834 = vmatpush1.msra.mxu0 %v810
        %835 = vmatprep.subr.mxu0 0.0
        %836 = vmatpush1.msra.mxu0 %v811
        %837 = vmatprep.subr.mxu0 0.0
        %838 = vmatpush1.msra.mxu0 %v812
        %839 = vmatprep.subr.mxu0 0.0
        %840 = vmatpush1.msra.mxu0 %v813
        %841 = vmatprep.subr.mxu0 0.0
        %842 = vmatpush1.msra.mxu0 %v814
        %843 = vmatprep.subr.mxu0 0.0
        %844 = vmatpush1.msra.mxu0 %v815
        %845 = vmatprep.subr.mxu0 0.0
        %846 = vmatpush1.msra.mxu0 %v816
        %847 = vmatprep.subr.mxu0 0.0
        %848 = vmatpush1.msra.mxu0 %v817
        %849 = vmatprep.subr.mxu0 0.0
        %850 = vmatpush1.msra.mxu0 %v818
        %851 = vmatprep.subr.mxu0 0.0
        %852 = vmatpush1.msra.mxu0 %v819
        %853 = vmatprep.subr.mxu0 0.0
        %854 = vmatpush1.msra.mxu0 %v820
        %855 = vmatprep.subr.mxu0 0.0
        %856 = vmatpush1.msra.mxu0 %v821
        %857 = vmatprep.subr.mxu0 0.0
        %858 = vmatpush1.msra.mxu0 %v822
        %859 = vmatprep.subr.mxu0 0.0
        %860 = vmatpush1.msra.mxu0 %v823
        %861 = vmatprep.subr.mxu0 0.0
        %862 = vmatpush1.msra.mxu0 %v824
        %863 = vmatprep.subr.mxu0 0.0
        %864 = vmatpush1.msra.mxu0 %v825
        %865 = vmatprep.subr.mxu0 0.0
        %866 = vmatpush1.msra.mxu0 0.0
        %867 = vmatprep.subr.mxu0 0.0
        %868 = vmatpush1.msra.mxu0 0.0
        %869 = vmatprep.subr.mxu0 0.0
        %870 = vmatpush1.msra.mxu0 0.0
        %871 = vmatprep.subr.mxu0 0.0
        %872 = vmatpush1.msra.mxu0 0.0
        %873 = vmatprep.subr.mxu0 0.0
        %874 = vmatpush1.msra.mxu0 0.0
        %875 = vmatprep.subr.mxu0 0.0
        %876 = vmatpush1.msra.mxu0 0.0
        %877 = vmatprep.subr.mxu0 0.0
        %878 = vmatpush1.msra.mxu0 0.0
        %879 = vmatprep.subr.mxu0 0.0
        %880 = vmatpush1.msra.mxu0 0.0
        %881 = vmatprep.subr.mxu0 0.0
        %882 = vmatpush1.msra.mxu0 0.0
        %883 = vmatprep.subr.mxu0 0.0
        %884 = vmatpush1.msra.mxu0 0.0
        %885 = vmatprep.subr.mxu0 0.0
        %886 = vmatpush1.msra.mxu0 0.0
        %887 = vmatprep.subr.mxu0 0.0
        %888 = vmatpush1.msra.mxu0 0.0
        %889 = vmatprep.subr.mxu0 0.0
        %890 = vmatpush1.msra.mxu0 0.0
        %891 = vmatprep.subr.mxu0 0.0
        %892 = vmatpush1.msra.mxu0 0.0
        %893 = vmatprep.subr.mxu0 0.0
        %894 = vmatpush1.msra.mxu0 0.0
        %895 = vmatprep.subr.mxu0 0.0
        %896 = vmatpush1.msra.mxu0 0.0
        %897 = vmatprep.mubr.f32.mxu0 0.0
        %898 = vmatmul.mubr.f32.gmra.mrb[0].mxu0 %v809
        %v899 = vpop.f32.mrb[0].mxu0
        %v900 = vadd.f32 %v831, %v899
        %v901 = vpop.f32.mrb[0].mxu0
        %902 = vdwg.mxu0
        %v903 = vmul.f32 %v900, 0.17677669
        %v904 = vld [vmem:[#allocation2] sm:$0xff]
        %v905 = vld [vmem:[#allocation3] sm:$0xff]
        %vm906 = vcmask 261120
        %v908 = vsel %vm906, %v903, 0
        %v911 = vsel %vm906, %v904, 0
        %913 = vmatprep.subr.mxu0 0.0
        %914 = vmatpush1.xpose.msra.mxu0 %v911
        %915 = vmatprep.subr.mxu0 0.0
        %916 = vmatpush1.xpose.msra.mxu0 0.0
        %917 = vmatprep.subr.mxu0 0.0
        %918 = vmatpush1.xpose.msra.mxu0 0.0
        %919 = vmatprep.subr.mxu0 0.0
        %920 = vmatpush1.xpose.msra.mxu0 0.0
        %921 = vmatprep.subr.mxu0 0.0
        %922 = vmatpush1.xpose.msra.mxu0 0.0
        %923 = vmatprep.subr.mxu0 0.0
        %924 = vmatpush1.xpose.msra.mxu0 0.0
        %925 = vmatprep.subr.mxu0 0.0
        %926 = vmatpush1.xpose.msra.mxu0 0.0
        %927 = vmatprep.subr.mxu0 0.0
        %928 = vmatpush1.xpose.msra.mxu0 0.0
        %929 = vmatprep.subr.mxu0 0.0
        %930 = vmatpush1.xpose.msra.mxu0 0.0
        %931 = vmatprep.subr.mxu0 0.0
        %932 = vmatpush1.xpose.msra.mxu0 0.0
        %933 = vmatprep.subr.mxu0 0.0
        %934 = vmatpush1.xpose.msra.mxu0 0.0
        %935 = vmatprep.subr.mxu0 0.0
        %936 = vmatpush1.xpose.msra.mxu0 0.0
        %937 = vmatprep.subr.mxu0 0.0
        %938 = vmatpush1.xpose.msra.mxu0 0.0
        %939 = vmatprep.subr.mxu0 0.0
        %940 = vmatpush1.xpose.msra.mxu0 0.0
        %941 = vmatprep.subr.mxu0 0.0
        %942 = vmatpush1.xpose.msra.mxu0 0.0
        %943 = vmatprep.subr.mxu0 0.0
        %944 = vmatpush1.xpose.msra.mxu0 0.0
        %945 = vmatprep.subr.mxu0 0.0
        %946 = vmatpush1.xpose.msra.mxu0 0.0
        %947 = vmatprep.subr.mxu0 0.0
        %948 = vmatpush1.xpose.msra.mxu0 0.0
        %949 = vmatprep.subr.mxu0 0.0
        %950 = vmatpush1.xpose.msra.mxu0 0.0
        %951 = vmatprep.subr.mxu0 0.0
        %952 = vmatpush1.xpose.msra.mxu0 0.0
        %953 = vmatprep.subr.mxu0 0.0
        %954 = vmatpush1.xpose.msra.mxu0 0.0
        %955 = vmatprep.subr.mxu0 0.0
        %956 = vmatpush1.xpose.msra.mxu0 0.0
        %957 = vmatprep.subr.mxu0 0.0
        %958 = vmatpush1.xpose.msra.mxu0 0.0
        %959 = vmatprep.subr.mxu0 0.0
        %960 = vmatpush1.xpose.msra.mxu0 0.0
        %961 = vmatprep.subr.mxu0 0.0
        %962 = vmatpush1.xpose.msra.mxu0 0.0
        %963 = vmatprep.subr.mxu0 0.0
        %964 = vmatpush1.xpose.msra.mxu0 0.0
        %965 = vmatprep.subr.mxu0 0.0
        %966 = vmatpush1.xpose.msra.mxu0 0.0
        %967 = vmatprep.subr.mxu0 0.0
        %968 = vmatpush1.xpose.msra.mxu0 0.0
        %969 = vmatprep.subr.mxu0 0.0
        %970 = vmatpush1.xpose.msra.mxu0 0.0
        %971 = vmatprep.subr.mxu0 0.0
        %972 = vmatpush1.xpose.msra.mxu0 0.0
        %973 = vmatprep.subr.mxu0 0.0
        %974 = vmatpush1.xpose.msra.mxu0 0.0
        %975 = vmatprep.subr.mxu0 0.0
        %976 = vmatpush1.xpose.msra.mxu0 0.0
        %977 = vmatprep.mubr.f32.mxu0 0.0
        %978 = vmatmul.mubr.f32.gmra.mrb[0].mxu0 %v908
        %v979 = vpop.f32.mrb[0].mxu0
        %v980 = vadd.f32 0.0, %v979
        %v981 = vpop.f32.mrb[0].mxu0
        %982 = vdwg.mxu0
        %vm983 = vcmask 64512
        %v984 = vsel %vm983, %v980, -inf
        %985 = vmax.xlane.f32.xlu0 %v984
        %v986 = vpop.xlane.xlu0 %985
        %v987 = vsub.f32 %v980, %v986
        %v988 = vmul.f32 %v987, 1.442695
        %v989 = vpow.pop %v988
        %v990 = vsel %vm983, %v989, 0.0
        %991 = vadd.xlane.f32.xlu0 %v990
        %v992 = vpop.xlane.xlu0 %991
        %v993 = vrcp.pop %v992
        %v994 = vmul.f32 %v989, %v993
        %v996 = vsel %vm983, %v994, 0
        %998 = vmatprep.subr.mxu0 0.0
        %999 = vmatpush1.msra.mxu0 %v905
        %1000 = vmatprep.subr.mxu0 0.0
        %1001 = vmatpush1.msra.mxu0 0.0
        %1002 = vmatprep.subr.mxu0 0.0
        %1003 = vmatpush1.msra.mxu0 0.0
        %1004 = vmatprep.subr.mxu0 0.0
        %1005 = vmatpush1.msra.mxu0 0.0
        %1006 = vmatprep.subr.mxu0 0.0
        %1007 = vmatpush1.msra.mxu0 0.0
        %1008 = vmatprep.subr.mxu0 0.0
        %1009 = vmatpush1.msra.mxu0 0.0
        %1010 = vmatprep.subr.mxu0 0.0
        %1011 = vmatpush1.msra.mxu0 0.0
        %1012 = vmatprep.subr.mxu0 0.0
        %1013 = vmatpush1.msra.mxu0 0.0
        %1014 = vmatprep.subr.mxu0 0.0
        %1015 = vmatpush1.msra.mxu0 0.0
        %1016 = vmatprep.subr.mxu0 0.0
        %1017 = vmatpush1.msra.mxu0 0.0
        %1018 = vmatprep.subr.mxu0 0.0
        %1019 = vmatpush1.msra.mxu0 0.0
        %1020 = vmatprep.subr.mxu0 0.0
        %1021 = vmatpush1.msra.mxu0 0.0
        %1022 = vmatprep.subr.mxu0 0.0
        %1023 = vmatpush1.msra.mxu0 0.0
        %1024 = vmatprep.subr.mxu0 0.0
        %1025 = vmatpush1.msra.mxu0 0.0
        %1026 = vmatprep.subr.mxu0 0.0
        %1027 = vmatpush1.msra.mxu0 0.0
        %1028 = vmatprep.subr.mxu0 0.0
        %1029 = vmatpush1.msra.mxu0 0.0
        %1030 = vmatprep.subr.mxu0 0.0
        %1031 = vmatpush1.msra.mxu0 0.0
        %1032 = vmatprep.subr.mxu0 0.0
        %1033 = vmatpush1.msra.mxu0 0.0
        %1034 = vmatprep.subr.mxu0 0.0
        %1035 = vmatpush1.msra.mxu0 0.0
        %1036 = vmatprep.subr.mxu0 0.0
        %1037 = vmatpush1.msra.mxu0 0.0
        %1038 = vmatprep.subr.mxu0 0.0
        %1039 = vmatpush1.msra.mxu0 0.0
        %1040 = vmatprep.subr.mxu0 0.0
        %1041 = vmatpush1.msra.mxu0 0.0
        %1042 = vmatprep.subr.mxu0 0.0
        %1043 = vmatpush1.msra.mxu0 0.0
        %1044 = vmatprep.subr.mxu0 0.0
        %1045 = vmatpush1.msra.mxu0 0.0
        %1046 = vmatprep.subr.mxu0 0.0
        %1047 = vmatpush1.msra.mxu0 0.0
        %1048 = vmatprep.subr.mxu0 0.0
        %1049 = vmatpush1.msra.mxu0 0.0
        %1050 = vmatprep.subr.mxu0 0.0
        %1051 = vmatpush1.msra.mxu0 0.0
        %1052 = vmatprep.subr.mxu0 0.0
        %1053 = vmatpush1.msra.mxu0 0.0
        %1054 = vmatprep.subr.mxu0 0.0
        %1055 = vmatpush1.msra.mxu0 0.0
        %1056 = vmatprep.subr.mxu0 0.0
        %1057 = vmatpush1.msra.mxu0 0.0
        %1058 = vmatprep.subr.mxu0 0.0
        %1059 = vmatpush1.msra.mxu0 0.0
        %1060 = vmatprep.subr.mxu0 0.0
        %1061 = vmatpush1.msra.mxu0 0.0
        %1062 = vmatprep.mubr.f32.mxu0 0.0
        %1063 = vmatmul.mubr.f32.gmra.mrb[0].mxu0 %v996
        %v1064 = vpop.f32.mrb[0].mxu0
        %v1065 = vadd.f32 0.0, %v1064
        %v1066 = vpop.f32.mrb[0].mxu0
        %1067 = vdwg.mxu0
        %1068 = vrot.lane.b32.xlu0 %v903, 96
        %v1069 = vpop.permute.xlu0 %1068
        %1070 = vrot.lane.b32.xlu0 %v904, 96
        %v1071 = vpop.permute.xlu0 %1070
        %v1072 = vsel %vm906, %v1069, 0
        %v1074 = vsel %vm906, %v1071, 0
        %1076 = vmatprep.subr.mxu0 0.0
        %1077 = vmatpush1.xpose.msra.mxu0 %v1074
        %1078 = vmatprep.subr.mxu0 0.0
        %1079 = vmatpush1.xpose.msra.mxu0 0.0
        %1080 = vmatprep.subr.mxu0 0.0
        %1081 = vmatpush1.xpose.msra.mxu0 0.0
        %1082 = vmatprep.subr.mxu0 0.0
        %1083 = vmatpush1.xpose.msra.mxu0 0.0
        %1084 = vmatprep.subr.mxu0 0.0
        %1085 = vmatpush1.xpose.msra.mxu0 0.0
        %1086 = vmatprep.subr.mxu0 0.0
        %1087 = vmatpush1.xpose.msra.mxu0 0.0
        %1088 = vmatprep.subr.mxu0 0.0
        %1089 = vmatpush1.xpose.msra.mxu0 0.0
        %1090 = vmatprep.subr.mxu0 0.0
        %1091 = vmatpush1.xpose.msra.mxu0 0.0
        %1092 = vmatprep.subr.mxu0 0.0
        %1093 = vmatpush1.xpose.msra.mxu0 0.0
        %1094 = vmatprep.subr.mxu0 0.0
        %1095 = vmatpush1.xpose.msra.mxu0 0.0
        %1096 = vmatprep.subr.mxu0 0.0
        %1097 = vmatpush1.xpose.msra.mxu0 0.0
        %1098 = vmatprep.subr.mxu0 0.0
        %1099 = vmatpush1.xpose.msra.mxu0 0.0
        %1100 = vmatprep.subr.mxu0 0.0
        %1101 = vmatpush1.xpose.msra.mxu0 0.0
        %1102 = vmatprep.subr.mxu0 0.0
        %1103 = vmatpush1.xpose.msra.mxu0 0.0
        %1104 = vmatprep.subr.mxu0 0.0
        %1105 = vmatpush1.xpose.msra.mxu0 0.0
        %1106 = vmatprep.subr.mxu0 0.0
        %1107 = vmatpush1.xpose.msra.mxu0 0.0
        %1108 = vmatprep.subr.mxu0 0.0
        %1109 = vmatpush1.xpose.msra.mxu0 0.0
        %1110 = vmatprep.subr.mxu0 0.0
        %1111 = vmatpush1.xpose.msra.mxu0 0.0
        %1112 = vmatprep.subr.mxu0 0.0
        %1113 = vmatpush1.xpose.msra.mxu0 0.0
        %1114 = vmatprep.subr.mxu0 0.0
        %1115 = vmatpush1.xpose.msra.mxu0 0.0
        %1116 = vmatprep.subr.mxu0 0.0
        %1117 = vmatpush1.xpose.msra.mxu0 0.0
        %1118 = vmatprep.subr.mxu0 0.0
        %1119 = vmatpush1.xpose.msra.mxu0 0.0
        %1120 = vmatprep.subr.mxu0 0.0
        %1121 = vmatpush1.xpose.msra.mxu0 0.0
        %1122 = vmatprep.subr.mxu0 0.0
        %1123 = vmatpush1.xpose.msra.mxu0 0.0
        %1124 = vmatprep.subr.mxu0 0.0
        %1125 = vmatpush1.xpose.msra.mxu0 0.0
        %1126 = vmatprep.subr.mxu0 0.0
        %1127 = vmatpush1.xpose.msra.mxu0 0.0
        %1128 = vmatprep.subr.mxu0 0.0
        %1129 = vmatpush1.xpose.msra.mxu0 0.0
        %1130 = vmatprep.subr.mxu0 0.0
        %1131 = vmatpush1.xpose.msra.mxu0 0.0
        %1132 = vmatprep.subr.mxu0 0.0
        %1133 = vmatpush1.xpose.msra.mxu0 0.0
        %1134 = vmatprep.subr.mxu0 0.0
        %1135 = vmatpush1.xpose.msra.mxu0 0.0
        %1136 = vmatprep.subr.mxu0 0.0
        %1137 = vmatpush1.xpose.msra.mxu0 0.0
        %1138 = vmatprep.subr.mxu0 0.0
        %1139 = vmatpush1.xpose.msra.mxu0 0.0
        %1140 = vmatprep.mubr.f32.mxu0 0.0
        %1141 = vmatmul.mubr.f32.gmra.mrb[0].mxu0 %v1072
        %v1142 = vpop.f32.mrb[0].mxu0
        %v1143 = vadd.f32 0.0, %v1142
        %v1144 = vpop.f32.mrb[0].mxu0
        %1145 = vdwg.mxu0
        %v1146 = vsel %vm983, %v1143, -inf
        %1147 = vmax.xlane.f32.xlu0 %v1146
        %v1148 = vpop.xlane.xlu0 %1147
        %v1149 = vsub.f32 %v1143, %v1148
        %v1150 = vmul.f32 %v1149, 1.442695
        %v1151 = vpow.pop %v1150
        %v1152 = vsel %vm983, %v1151, 0.0
        %1153 = vadd.xlane.f32.xlu0 %v1152
        %v1154 = vpop.xlane.xlu0 %1153
        %v1155 = vrcp.pop %v1154
        %v1156 = vmul.f32 %v1151, %v1155
        %1158 = vrot.lane.b32.xlu0 %v905, 96
        %v1159 = vpop.permute.xlu0 %1158
        %v1162 = vsel %vm983, %v1156, 0
        %1164 = vmatprep.subr.mxu0 0.0
        %1165 = vmatpush1.msra.mxu0 %v1159
        %1166 = vmatprep.subr.mxu0 0.0
        %1167 = vmatpush1.msra.mxu0 0.0
        %1168 = vmatprep.subr.mxu0 0.0
        %1169 = vmatpush1.msra.mxu0 0.0
        %1170 = vmatprep.subr.mxu0 0.0
        %1171 = vmatpush1.msra.mxu0 0.0
        %1172 = vmatprep.subr.mxu0 0.0
        %1173 = vmatpush1.msra.mxu0 0.0
        %1174 = vmatprep.subr.mxu0 0.0
        %1175 = vmatpush1.msra.mxu0 0.0
        %1176 = vmatprep.subr.mxu0 0.0
        %1177 = vmatpush1.msra.mxu0 0.0
        %1178 = vmatprep.subr.mxu0 0.0
        %1179 = vmatpush1.msra.mxu0 0.0
        %1180 = vmatprep.subr.mxu0 0.0
        %1181 = vmatpush1.msra.mxu0 0.0
        %1182 = vmatprep.subr.mxu0 0.0
        %1183 = vmatpush1.msra.mxu0 0.0
        %1184 = vmatprep.subr.mxu0 0.0
        %1185 = vmatpush1.msra.mxu0 0.0
        %1186 = vmatprep.subr.mxu0 0.0
        %1187 = vmatpush1.msra.mxu0 0.0
        %1188 = vmatprep.subr.mxu0 0.0
        %1189 = vmatpush1.msra.mxu0 0.0
        %1190 = vmatprep.subr.mxu0 0.0
        %1191 = vmatpush1.msra.mxu0 0.0
        %1192 = vmatprep.subr.mxu0 0.0
        %1193 = vmatpush1.msra.mxu0 0.0
        %1194 = vmatprep.subr.mxu0 0.0
        %1195 = vmatpush1.msra.mxu0 0.0
        %1196 = vmatprep.subr.mxu0 0.0
        %1197 = vmatpush1.msra.mxu0 0.0
        %1198 = vmatprep.subr.mxu0 0.0
        %1199 = vmatpush1.msra.mxu0 0.0
        %1200 = vmatprep.subr.mxu0 0.0
        %1201 = vmatpush1.msra.mxu0 0.0
        %1202 = vmatprep.subr.mxu0 0.0
        %1203 = vmatpush1.msra.mxu0 0.0
        %1204 = vmatprep.subr.mxu0 0.0
        %1205 = vmatpush1.msra.mxu0 0.0
        %1206 = vmatprep.subr.mxu0 0.0
        %1207 = vmatpush1.msra.mxu0 0.0
        %1208 = vmatprep.subr.mxu0 0.0
        %1209 = vmatpush1.msra.mxu0 0.0
        %1210 = vmatprep.subr.mxu0 0.0
        %1211 = vmatpush1.msra.mxu0 0.0
        %1212 = vmatprep.subr.mxu0 0.0
        %1213 = vmatpush1.msra.mxu0 0.0
        %1214 = vmatprep.subr.mxu0 0.0
        %1215 = vmatpush1.msra.mxu0 0.0
        %1216 = vmatprep.subr.mxu0 0.0
        %1217 = vmatpush1.msra.mxu0 0.0
        %1218 = vmatprep.subr.mxu0 0.0
        %1219 = vmatpush1.msra.mxu0 0.0
        %1220 = vmatprep.subr.mxu0 0.0
        %1221 = vmatpush1.msra.mxu0 0.0
        %1222 = vmatprep.subr.mxu0 0.0
        %1223 = vmatpush1.msra.mxu0 0.0
        %1224 = vmatprep.subr.mxu0 0.0
        %1225 = vmatpush1.msra.mxu0 0.0
        %1226 = vmatprep.subr.mxu0 0.0
        %1227 = vmatpush1.msra.mxu0 0.0
        %1228 = vmatprep.mubr.f32.mxu0 0.0
        %1229 = vmatmul.mubr.f32.gmra.mrb[0].mxu0 %v1162
        %v1230 = vpop.f32.mrb[0].mxu0
        %v1231 = vadd.f32 0.0, %v1230
        %v1232 = vpop.f32.mrb[0].mxu0
        %1233 = vdwg.mxu0
        %1234 = vrot.lane.b32.xlu0 %v903, 64
        %v1235 = vpop.permute.xlu0 %1234
        %1236 = vrot.lane.b32.xlu0 %v904, 64
        %v1237 = vpop.permute.xlu0 %1236
        %v1238 = vsel %vm906, %v1235, 0
        %v1240 = vsel %vm906, %v1237, 0
        %1242 = vmatprep.subr.mxu0 0.0
        %1243 = vmatpush1.xpose.msra.mxu0 %v1240
        %1244 = vmatprep.subr.mxu0 0.0
        %1245 = vmatpush1.xpose.msra.mxu0 0.0
        %1246 = vmatprep.subr.mxu0 0.0
        %1247 = vmatpush1.xpose.msra.mxu0 0.0
        %1248 = vmatprep.subr.mxu0 0.0
        %1249 = vmatpush1.xpose.msra.mxu0 0.0
        %1250 = vmatprep.subr.mxu0 0.0
        %1251 = vmatpush1.xpose.msra.mxu0 0.0
        %1252 = vmatprep.subr.mxu0 0.0
        %1253 = vmatpush1.xpose.msra.mxu0 0.0
        %1254 = vmatprep.subr.mxu0 0.0
        %1255 = vmatpush1.xpose.msra.mxu0 0.0
        %1256 = vmatprep.subr.mxu0 0.0
        %1257 = vmatpush1.xpose.msra.mxu0 0.0
        %1258 = vmatprep.subr.mxu0 0.0
        %1259 = vmatpush1.xpose.msra.mxu0 0.0
        %1260 = vmatprep.subr.mxu0 0.0
        %1261 = vmatpush1.xpose.msra.mxu0 0.0
        %1262 = vmatprep.subr.mxu0 0.0
        %1263 = vmatpush1.xpose.msra.mxu0 0.0
        %1264 = vmatprep.subr.mxu0 0.0
        %1265 = vmatpush1.xpose.msra.mxu0 0.0
        %1266 = vmatprep.subr.mxu0 0.0
        %1267 = vmatpush1.xpose.msra.mxu0 0.0
        %1268 = vmatprep.subr.mxu0 0.0
        %1269 = vmatpush1.xpose.msra.mxu0 0.0
        %1270 = vmatprep.subr.mxu0 0.0
        %1271 = vmatpush1.xpose.msra.mxu0 0.0
        %1272 = vmatprep.subr.mxu0 0.0
        %1273 = vmatpush1.xpose.msra.mxu0 0.0
        %1274 = vmatprep.subr.mxu0 0.0
        %1275 = vmatpush1.xpose.msra.mxu0 0.0
        %1276 = vmatprep.subr.mxu0 0.0
        %1277 = vmatpush1.xpose.msra.mxu0 0.0
        %1278 = vmatprep.subr.mxu0 0.0
        %1279 = vmatpush1.xpose.msra.mxu0 0.0
        %1280 = vmatprep.subr.mxu0 0.0
        %1281 = vmatpush1.xpose.msra.mxu0 0.0
        %1282 = vmatprep.subr.mxu0 0.0
        %1283 = vmatpush1.xpose.msra.mxu0 0.0
        %1284 = vmatprep.subr.mxu0 0.0
        %1285 = vmatpush1.xpose.msra.mxu0 0.0
        %1286 = vmatprep.subr.mxu0 0.0
        %1287 = vmatpush1.xpose.msra.mxu0 0.0
        %1288 = vmatprep.subr.mxu0 0.0
        %1289 = vmatpush1.xpose.msra.mxu0 0.0
        %1290 = vmatprep.subr.mxu0 0.0
        %1291 = vmatpush1.xpose.msra.mxu0 0.0
        %1292 = vmatprep.subr.mxu0 0.0
        %1293 = vmatpush1.xpose.msra.mxu0 0.0
        %1294 = vmatprep.subr.mxu0 0.0
        %1295 = vmatpush1.xpose.msra.mxu0 0.0
        %1296 = vmatprep.subr.mxu0 0.0
        %1297 = vmatpush1.xpose.msra.mxu0 0.0
        %1298 = vmatprep.subr.mxu0 0.0
        %1299 = vmatpush1.xpose.msra.mxu0 0.0
        %1300 = vmatprep.subr.mxu0 0.0
        %1301 = vmatpush1.xpose.msra.mxu0 0.0
        %1302 = vmatprep.subr.mxu0 0.0
        %1303 = vmatpush1.xpose.msra.mxu0 0.0
        %1304 = vmatprep.subr.mxu0 0.0
        %1305 = vmatpush1.xpose.msra.mxu0 0.0
        %1306 = vmatprep.mubr.f32.mxu0 0.0
        %1307 = vmatmul.mubr.f32.gmra.mrb[0].mxu0 %v1238
        %v1308 = vpop.f32.mrb[0].mxu0
        %v1309 = vadd.f32 0.0, %v1308
        %v1310 = vpop.f32.mrb[0].mxu0
        %1311 = vdwg.mxu0
        %v1312 = vsel %vm983, %v1309, -inf
        %1313 = vmax.xlane.f32.xlu0 %v1312
        %v1314 = vpop.xlane.xlu0 %1313
        %v1315 = vsub.f32 %v1309, %v1314
        %v1316 = vmul.f32 %v1315, 1.442695
        %v1317 = vpow.pop %v1316
        %v1318 = vsel %vm983, %v1317, 0.0
        %1319 = vadd.xlane.f32.xlu0 %v1318
        %v1320 = vpop.xlane.xlu0 %1319
        %v1321 = vrcp.pop %v1320
        %v1322 = vmul.f32 %v1317, %v1321
        %1323 = vrot.lane.b32.xlu0 %v905, 64
        %v1324 = vpop.permute.xlu0 %1323
        %v1327 = vsel %vm983, %v1322, 0
        %1329 = vmatprep.subr.mxu0 0.0
        %1330 = vmatpush1.msra.mxu0 %v1324
        %1331 = vmatprep.subr.mxu0 0.0
        %1332 = vmatpush1.msra.mxu0 0.0
        %1333 = vmatprep.subr.mxu0 0.0
        %1334 = vmatpush1.msra.mxu0 0.0
        %1335 = vmatprep.subr.mxu0 0.0
        %1336 = vmatpush1.msra.mxu0 0.0
        %1337 = vmatprep.subr.mxu0 0.0
        %1338 = vmatpush1.msra.mxu0 0.0
        %1339 = vmatprep.subr.mxu0 0.0
        %1340 = vmatpush1.msra.mxu0 0.0
        %1341 = vmatprep.subr.mxu0 0.0
        %1342 = vmatpush1.msra.mxu0 0.0
        %1343 = vmatprep.subr.mxu0 0.0
        %1344 = vmatpush1.msra.mxu0 0.0
        %1345 = vmatprep.subr.mxu0 0.0
        %1346 = vmatpush1.msra.mxu0 0.0
        %1347 = vmatprep.subr.mxu0 0.0
        %1348 = vmatpush1.msra.mxu0 0.0
        %1349 = vmatprep.subr.mxu0 0.0
        %1350 = vmatpush1.msra.mxu0 0.0
        %1351 = vmatprep.subr.mxu0 0.0
        %1352 = vmatpush1.msra.mxu0 0.0
        %1353 = vmatprep.subr.mxu0 0.0
        %1354 = vmatpush1.msra.mxu0 0.0
        %1355 = vmatprep.subr.mxu0 0.0
        %1356 = vmatpush1.msra.mxu0 0.0
        %1357 = vmatprep.subr.mxu0 0.0
        %1358 = vmatpush1.msra.mxu0 0.0
        %1359 = vmatprep.subr.mxu0 0.0
        %1360 = vmatpush1.msra.mxu0 0.0
        %1361 = vmatprep.subr.mxu0 0.0
        %1362 = vmatpush1.msra.mxu0 0.0
        %1363 = vmatprep.subr.mxu0 0.0
        %1364 = vmatpush1.msra.mxu0 0.0
        %1365 = vmatprep.subr.mxu0 0.0
        %1366 = vmatpush1.msra.mxu0 0.0
        %1367 = vmatprep.subr.mxu0 0.0
        %1368 = vmatpush1.msra.mxu0 0.0
        %1369 = vmatprep.subr.mxu0 0.0
        %1370 = vmatpush1.msra.mxu0 0.0
        %1371 = vmatprep.subr.mxu0 0.0
        %1372 = vmatpush1.msra.mxu0 0.0
        %1373 = vmatprep.subr.mxu0 0.0
        %1374 = vmatpush1.msra.mxu0 0.0
        %1375 = vmatprep.subr.mxu0 0.0
        %1376 = vmatpush1.msra.mxu0 0.0
        %1377 = vmatprep.subr.mxu0 0.0
        %1378 = vmatpush1.msra.mxu0 0.0
        %1379 = vmatprep.subr.mxu0 0.0
        %1380 = vmatpush1.msra.mxu0 0.0
        %1381 = vmatprep.subr.mxu0 0.0
        %1382 = vmatpush1.msra.mxu0 0.0
        %1383 = vmatprep.subr.mxu0 0.0
        %1384 = vmatpush1.msra.mxu0 0.0
        %1385 = vmatprep.subr.mxu0 0.0
        %1386 = vmatpush1.msra.mxu0 0.0
        %1387 = vmatprep.subr.mxu0 0.0
        %1388 = vmatpush1.msra.mxu0 0.0
        %1389 = vmatprep.subr.mxu0 0.0
        %1390 = vmatpush1.msra.mxu0 0.0
        %1391 = vmatprep.subr.mxu0 0.0
        %1392 = vmatpush1.msra.mxu0 0.0
        %1393 = vmatprep.mubr.f32.mxu0 0.0
        %1394 = vmatmul.mubr.f32.gmra.mrb[0].mxu0 %v1327
        %v1395 = vpop.f32.mrb[0].mxu0
        %v1396 = vadd.f32 0.0, %v1395
        %v1397 = vpop.f32.mrb[0].mxu0
        %1398 = vdwg.mxu0
        %1399 = vrot.lane.b32.xlu0 %v903, 32
        %v1400 = vpop.permute.xlu0 %1399
        %1401 = vrot.lane.b32.xlu0 %v904, 32
        %v1402 = vpop.permute.xlu0 %1401
        %v1403 = vsel %vm906, %v1400, 0
        %v1405 = vsel %vm906, %v1402, 0
        %1407 = vmatprep.subr.mxu0 0.0
        %1408 = vmatpush1.xpose.msra.mxu0 %v1405
        %1409 = vmatprep.subr.mxu0 0.0
        %1410 = vmatpush1.xpose.msra.mxu0 0.0
        %1411 = vmatprep.subr.mxu0 0.0
        %1412 = vmatpush1.xpose.msra.mxu0 0.0
        %1413 = vmatprep.subr.mxu0 0.0
        %1414 = vmatpush1.xpose.msra.mxu0 0.0
        %1415 = vmatprep.subr.mxu0 0.0
        %1416 = vmatpush1.xpose.msra.mxu0 0.0
        %1417 = vmatprep.subr.mxu0 0.0
        %1418 = vmatpush1.xpose.msra.mxu0 0.0
        %1419 = vmatprep.subr.mxu0 0.0
        %1420 = vmatpush1.xpose.msra.mxu0 0.0
        %1421 = vmatprep.subr.mxu0 0.0
        %1422 = vmatpush1.xpose.msra.mxu0 0.0
        %1423 = vmatprep.subr.mxu0 0.0
        %1424 = vmatpush1.xpose.msra.mxu0 0.0
        %1425 = vmatprep.subr.mxu0 0.0
        %1426 = vmatpush1.xpose.msra.mxu0 0.0
        %1427 = vmatprep.subr.mxu0 0.0
        %1428 = vmatpush1.xpose.msra.mxu0 0.0
        %1429 = vmatprep.subr.mxu0 0.0
        %1430 = vmatpush1.xpose.msra.mxu0 0.0
        %1431 = vmatprep.subr.mxu0 0.0
        %1432 = vmatpush1.xpose.msra.mxu0 0.0
        %1433 = vmatprep.subr.mxu0 0.0
        %1434 = vmatpush1.xpose.msra.mxu0 0.0
        %1435 = vmatprep.subr.mxu0 0.0
        %1436 = vmatpush1.xpose.msra.mxu0 0.0
        %1437 = vmatprep.subr.mxu0 0.0
        %1438 = vmatpush1.xpose.msra.mxu0 0.0
        %1439 = vmatprep.subr.mxu0 0.0
        %1440 = vmatpush1.xpose.msra.mxu0 0.0
        %1441 = vmatprep.subr.mxu0 0.0
        %1442 = vmatpush1.xpose.msra.mxu0 0.0
        %1443 = vmatprep.subr.mxu0 0.0
        %1444 = vmatpush1.xpose.msra.mxu0 0.0
        %1445 = vmatprep.subr.mxu0 0.0
        %1446 = vmatpush1.xpose.msra.mxu0 0.0
        %1447 = vmatprep.subr.mxu0 0.0
        %1448 = vmatpush1.xpose.msra.mxu0 0.0
        %1449 = vmatprep.subr.mxu0 0.0
        %1450 = vmatpush1.xpose.msra.mxu0 0.0
        %1451 = vmatprep.subr.mxu0 0.0
        %1452 = vmatpush1.xpose.msra.mxu0 0.0
        %1453 = vmatprep.subr.mxu0 0.0
        %1454 = vmatpush1.xpose.msra.mxu0 0.0
        %1455 = vmatprep.subr.mxu0 0.0
        %1456 = vmatpush1.xpose.msra.mxu0 0.0
        %1457 = vmatprep.subr.mxu0 0.0
        %1458 = vmatpush1.xpose.msra.mxu0 0.0
        %1459 = vmatprep.subr.mxu0 0.0
        %1460 = vmatpush1.xpose.msra.mxu0 0.0
        %1461 = vmatprep.subr.mxu0 0.0
        %1462 = vmatpush1.xpose.msra.mxu0 0.0
        %1463 = vmatprep.subr.mxu0 0.0
        %1464 = vmatpush1.xpose.msra.mxu0 0.0
        %1465 = vmatprep.subr.mxu0 0.0
        %1466 = vmatpush1.xpose.msra.mxu0 0.0
        %1467 = vmatprep.subr.mxu0 0.0
        %1468 = vmatpush1.xpose.msra.mxu0 0.0
        %1469 = vmatprep.subr.mxu0 0.0
        %1470 = vmatpush1.xpose.msra.mxu0 0.0
        %1471 = vmatprep.mubr.f32.mxu0 0.0
        %1472 = vmatmul.mubr.f32.gmra.mrb[0].mxu0 %v1403
        %v1473 = vpop.f32.mrb[0].mxu0
        %v1474 = vadd.f32 0.0, %v1473
        %v1475 = vpop.f32.mrb[0].mxu0
        %1476 = vdwg.mxu0
        %v1477 = vsel %vm983, %v1474, -inf
        %1478 = vmax.xlane.f32.xlu0 %v1477
        %v1479 = vpop.xlane.xlu0 %1478
        %v1480 = vsub.f32 %v1474, %v1479
        %v1481 = vmul.f32 %v1480, 1.442695
        %v1482 = vpow.pop %v1481
        %v1483 = vsel %vm983, %v1482, 0.0
        %1484 = vadd.xlane.f32.xlu0 %v1483
        %v1485 = vpop.xlane.xlu0 %1484
        %v1486 = vrcp.pop %v1485
        %v1487 = vmul.f32 %v1482, %v1486
        %1488 = vrot.lane.b32.xlu0 %v905, 32
        %v1489 = vpop.permute.xlu0 %1488
        %v1492 = vsel %vm983, %v1487, 0
        %1494 = vmatprep.subr.mxu0 0.0
        %1495 = vmatpush1.msra.mxu0 %v1489
        %1496 = vmatprep.subr.mxu0 0.0
        %1497 = vmatpush1.msra.mxu0 0.0
        %1498 = vmatprep.subr.mxu0 0.0
        %1499 = vmatpush1.msra.mxu0 0.0
        %1500 = vmatprep.subr.mxu0 0.0
        %1501 = vmatpush1.msra.mxu0 0.0
        %1502 = vmatprep.subr.mxu0 0.0
        %1503 = vmatpush1.msra.mxu0 0.0
        %1504 = vmatprep.subr.mxu0 0.0
        %1505 = vmatpush1.msra.mxu0 0.0
        %1506 = vmatprep.subr.mxu0 0.0
        %1507 = vmatpush1.msra.mxu0 0.0
        %1508 = vmatprep.subr.mxu0 0.0
        %1509 = vmatpush1.msra.mxu0 0.0
        %1510 = vmatprep.subr.mxu0 0.0
        %1511 = vmatpush1.msra.mxu0 0.0
        %1512 = vmatprep.subr.mxu0 0.0
        %1513 = vmatpush1.msra.mxu0 0.0
        %1514 = vmatprep.subr.mxu0 0.0
        %1515 = vmatpush1.msra.mxu0 0.0
        %1516 = vmatprep.subr.mxu0 0.0
        %1517 = vmatpush1.msra.mxu0 0.0
        %1518 = vmatprep.subr.mxu0 0.0
        %1519 = vmatpush1.msra.mxu0 0.0
        %1520 = vmatprep.subr.mxu0 0.0
        %1521 = vmatpush1.msra.mxu0 0.0
        %1522 = vmatprep.subr.mxu0 0.0
        %1523 = vmatpush1.msra.mxu0 0.0
        %1524 = vmatprep.subr.mxu0 0.0
        %1525 = vmatpush1.msra.mxu0 0.0
        %1526 = vmatprep.subr.mxu0 0.0
        %1527 = vmatpush1.msra.mxu0 0.0
        %1528 = vmatprep.subr.mxu0 0.0
        %1529 = vmatpush1.msra.mxu0 0.0
        %1530 = vmatprep.subr.mxu0 0.0
        %1531 = vmatpush1.msra.mxu0 0.0
        %1532 = vmatprep.subr.mxu0 0.0
        %1533 = vmatpush1.msra.mxu0 0.0
        %1534 = vmatprep.subr.mxu0 0.0
        %1535 = vmatpush1.msra.mxu0 0.0
        %1536 = vmatprep.subr.mxu0 0.0
        %1537 = vmatpush1.msra.mxu0 0.0
        %1538 = vmatprep.subr.mxu0 0.0
        %1539 = vmatpush1.msra.mxu0 0.0
        %1540 = vmatprep.subr.mxu0 0.0
        %1541 = vmatpush1.msra.mxu0 0.0
        %1542 = vmatprep.subr.mxu0 0.0
        %1543 = vmatpush1.msra.mxu0 0.0
        %1544 = vmatprep.subr.mxu0 0.0
        %1545 = vmatpush1.msra.mxu0 0.0
        %1546 = vmatprep.subr.mxu0 0.0
        %1547 = vmatpush1.msra.mxu0 0.0
        %1548 = vmatprep.subr.mxu0 0.0
        %1549 = vmatpush1.msra.mxu0 0.0
        %1550 = vmatprep.subr.mxu0 0.0
        %1551 = vmatpush1.msra.mxu0 0.0
        %1552 = vmatprep.subr.mxu0 0.0
        %1553 = vmatpush1.msra.mxu0 0.0
        %1554 = vmatprep.subr.mxu0 0.0
        %1555 = vmatpush1.msra.mxu0 0.0
        %1556 = vmatprep.subr.mxu0 0.0
        %1557 = vmatpush1.msra.mxu0 0.0
        %1558 = vmatprep.mubr.f32.mxu0 0.0
        %1559 = vmatmul.mubr.f32.gmra.mrb[0].mxu0 %v1492
        %v1560 = vpop.f32.mrb[0].mxu0
        %v1561 = vadd.f32 0.0, %v1560
        %v1562 = vpop.f32.mrb[0].mxu0
        %1563 = vdwg.mxu0
        %1565 = vrot.lane.b32.xlu0 %v1231, 32
        %v1566 = vpop.permute.xlu0 %1565
        %1569 = vrot.lane.b32.xlu0 %v1396, 64
        %v1570 = vpop.permute.xlu0 %1569
        %1573 = vrot.lane.b32.xlu0 %v1561, 96
        %v1574 = vpop.permute.xlu0 %1573
        %v1576 = vsel %vm906, %v1065, %v1566
        %vm1577 = vcmask 523264
        %v1578 = vsel %vm1577, %v1576, %v1570
        %vm1579 = vcmask 785408
        %v1580 = vsel %vm1579, %v1578, %v1574
        %v1581 = vld [vmem:[#allocation18] sm:$0xff]
        %v1582 = vld [vmem:[#allocation18 + $0x8] sm:$0xff]
        %v1583 = vld [vmem:[#allocation18 + $0x10] sm:$0xff]
        %v1584 = vld [vmem:[#allocation18 + $0x18] sm:$0xff]
        %v1585 = vld [vmem:[#allocation18 + $0x20] sm:$0xff]
        %v1586 = vld [vmem:[#allocation18 + $0x28] sm:$0xff]
        %v1587 = vld [vmem:[#allocation18 + $0x30] sm:$0xff]
        %v1588 = vld [vmem:[#allocation18 + $0x38] sm:$0xff]
        %v1589 = vld [vmem:[#allocation18 + $0x40] sm:$0xff]
        %v1590 = vld [vmem:[#allocation18 + $0x48] sm:$0xff]
        %v1591 = vld [vmem:[#allocation18 + $0x50] sm:$0xff]
        %v1592 = vld [vmem:[#allocation18 + $0x58] sm:$0xff]
        %v1593 = vld [vmem:[#allocation18 + $0x60] sm:$0xff]
        %v1594 = vld [vmem:[#allocation18 + $0x68] sm:$0xff]
        %v1595 = vld [vmem:[#allocation18 + $0x70] sm:$0xff]
        %v1596 = vld [vmem:[#allocation18 + $0x78] sm:$0xff]
        %v1597 = vld [vmem:[#allocation19] sm:$0x1]
        %v1599 = vlaneseq
        %v1600 = vshrl.u32 %v1599, 7
        %v1601 = vsub.s32 0, %v1600
        %v1602 = vrot.slane %v1597, %v1601
        %1604 = vmatprep.subr.mxu0 0.0
        %1605 = vmatpush1.msra.mxu0 %v1581
        %1606 = vmatprep.subr.mxu0 0.0
        %1607 = vmatpush1.msra.mxu0 %v1582
        %1608 = vmatprep.subr.mxu0 0.0
        %1609 = vmatpush1.msra.mxu0 %v1583
        %1610 = vmatprep.subr.mxu0 0.0
        %1611 = vmatpush1.msra.mxu0 %v1584
        %1612 = vmatprep.subr.mxu0 0.0
        %1613 = vmatpush1.msra.mxu0 %v1585
        %1614 = vmatprep.subr.mxu0 0.0
        %1615 = vmatpush1.msra.mxu0 %v1586
        %1616 = vmatprep.subr.mxu0 0.0
        %1617 = vmatpush1.msra.mxu0 %v1587
        %1618 = vmatprep.subr.mxu0 0.0
        %1619 = vmatpush1.msra.mxu0 %v1588
        %1620 = vmatprep.subr.mxu0 0.0
        %1621 = vmatpush1.msra.mxu0 %v1589
        %1622 = vmatprep.subr.mxu0 0.0
        %1623 = vmatpush1.msra.mxu0 %v1590
        %1624 = vmatprep.subr.mxu0 0.0
        %1625 = vmatpush1.msra.mxu0 %v1591
        %1626 = vmatprep.subr.mxu0 0.0
        %1627 = vmatpush1.msra.mxu0 %v1592
        %1628 = vmatprep.subr.mxu0 0.0
        %1629 = vmatpush1.msra.mxu0 %v1593
        %1630 = vmatprep.subr.mxu0 0.0
        %1631 = vmatpush1.msra.mxu0 %v1594
        %1632 = vmatprep.subr.mxu0 0.0
        %1633 = vmatpush1.msra.mxu0 %v1595
        %1634 = vmatprep.subr.mxu0 0.0
        %1635 = vmatpush1.msra.mxu0 %v1596
        %1636 = vmatprep.subr.mxu0 0.0
        %1637 = vmatpush1.msra.mxu0 0.0
        %1638 = vmatprep.subr.mxu0 0.0
        %1639 = vmatpush1.msra.mxu0 0.0
        %1640 = vmatprep.subr.mxu0 0.0
        %1641 = vmatpush1.msra.mxu0 0.0
        %1642 = vmatprep.subr.mxu0 0.0
        %1643 = vmatpush1.msra.mxu0 0.0
        %1644 = vmatprep.subr.mxu0 0.0
        %1645 = vmatpush1.msra.mxu0 0.0
        %1646 = vmatprep.subr.mxu0 0.0
        %1647 = vmatpush1.msra.mxu0 0.0
        %1648 = vmatprep.subr.mxu0 0.0
        %1649 = vmatpush1.msra.mxu0 0.0
        %1650 = vmatprep.subr.mxu0 0.0
        %1651 = vmatpush1.msra.mxu0 0.0
        %1652 = vmatprep.subr.mxu0 0.0
        %1653 = vmatpush1.msra.mxu0 0.0
        %1654 = vmatprep.subr.mxu0 0.0
        %1655 = vmatpush1.msra.mxu0 0.0
        %1656 = vmatprep.subr.mxu0 0.0
        %1657 = vmatpush1.msra.mxu0 0.0
        %1658 = vmatprep.subr.mxu0 0.0
        %1659 = vmatpush1.msra.mxu0 0.0
        %1660 = vmatprep.subr.mxu0 0.0
        %1661 = vmatpush1.msra.mxu0 0.0
        %1662 = vmatprep.subr.mxu0 0.0
        %1663 = vmatpush1.msra.mxu0 0.0
        %1664 = vmatprep.subr.mxu0 0.0
        %1665 = vmatpush1.msra.mxu0 0.0
        %1666 = vmatprep.subr.mxu0 0.0
        %1667 = vmatpush1.msra.mxu0 0.0
        %1668 = vmatprep.mubr.f32.mxu0 0.0
        %1669 = vmatmul.mubr.f32.gmra.mrb[0].mxu0 %v1580
        %v1670 = vpop.f32.mrb[0].mxu0
        %v1671 = vadd.f32 %v1602, %v1670
        %v1672 = vpop.f32.mrb[0].mxu0
        %1673 = vdwg.mxu0
        %v1674 = vadd.f32 %v809, %v1671
        %1675 = vadd.xlane.f32.xlu0 %v1674
        %v1676 = vpop.xlane.xlu0 %1675
        %v1677 = vrcp.pop 128.0
        %v1678 = vmul.f32 %v1676, %v1677
        %v1679 = vsub.f32 %v1674, %v1678
        %v1680 = vmul.f32 %v1679, %v1679
        %1681 = vadd.xlane.f32.xlu0 %v1680
        %v1682 = vpop.xlane.xlu0 %1681
        %v1683 = vmul.f32 %v1682, %v1677
        %v1684 = vadd.f32 %v1683, 1e-05
        %v1685 = vrsqrt.pop %v1684
        %v1686 = vmul.f32 %v1679, %v1685
        %v1687 = vld [vmem:[#allocation21] sm:$0x1]
        %v1689 = vlaneseq
        %v1690 = vshrl.u32 %v1689, 7
        %v1691 = vsub.s32 0, %v1690
        %v1692 = vrot.slane %v1687, %v1691
        %v1694 = vmul.f32 %v1686, %v1692
        %v1695 = vld [vmem:[#allocation22] sm:$0x1]
        %v1697 = vlaneseq
        %v1698 = vshrl.u32 %v1697, 7
        %v1699 = vsub.s32 0, %v1698
        %v1700 = vrot.slane %v1695, %v1699
        %v1702 = vadd.f32 %v1694, %v1700
        %1703 = vst [vmem:[%s615] sm:$0xff] %v1702
        %s1704 = sand.u32 %s323, 1
        %s1705 = scalar_lea.sflag [#allocation6], %s1704
        %s1706 = sand.u32 %s323, 1
        %s1707 = smul.addr %s1706, 8
        %s1708 = scalar_lea.vmem [#allocation24], %s1707
        // Predicated region
        $region121: #{tpu_custom_call.1} parent=67 // pred_check
          %p1709 = pneg %p333
        $region122: #{tpu_custom_call.1} parent=67 // pred_check_branch
          %1711 = sbr.rel (%p1709) target = $region124
        $region123: #{tpu_custom_call.1} parent=67 // pred_region
          %s1713 = ssub.s32 128, 128
          %1714 = vsyncadd %s1705, %s1713
          %s1715 = sadd.s32 %s42, %s41
          %s1716 = smul.addr %s1715, 128
          %s1717 = scalar_lea.hbm %s12, %s1716
          %s1719 = sshll.u32 %s1708, 4
          %s1720 = int_to_ptr.vmem [resolvable:$true] %s1719
          %1722 = dma.vmem_to_hbm [thread:$0]  %s1720, 128, %s1717, %s1705
        $region124: #{tpu_custom_call.1} parent=67 // pred_fallthru
          _
      $region68: #{tpu_custom_call.1} parent=5 // pred_fallthru
        _
      %p1723 = scmp.le.s32.totalorder 2, %s32
      // Predicated region
      $region125: #{tpu_custom_call.1} parent=5 // pred_check
        %p1724 = pneg %p1723
      $region126: #{tpu_custom_call.1} parent=5 // pred_check_branch
        %1726 = sbr.rel (%p1724) target = $region128
      $region127: #{tpu_custom_call.1} parent=5 // pred_region
        %s1727 = ssub.s32 %s32, 2
        // Predicated region
        $region129: #{tpu_custom_call.1} parent=127 // pred_check
          %p1728 = pneg %p339
        $region130: #{tpu_custom_call.1} parent=127 // pred_check_branch
          %1730 = sbr.rel (%p1728) target = $region132
        $region131: #{tpu_custom_call.1} parent=127 // pred_region
          %s1731 = sand.u32 %s324, 1
          %s1732 = scalar_lea.sflag [#allocation6], %s1731
          %s1733 = sand.u32 %s324, 1
          %s1734 = smul.addr %s1733, 8
          %s1735 = scalar_lea.vmem [#allocation24], %s1734
          %1736 = dma.done %s1732, 128
        $region132: #{tpu_custom_call.1} parent=127 // pred_fallthru
          _
      $region128: #{tpu_custom_call.1} parent=5 // pred_fallthru
        _
    $region6: #{tpu_custom_call.1} parent=1 // loop_footer
      %s36 = sadd.s32 1, %s32
    $region7: #{tpu_custom_call.1} parent=1 // loop_footer_branch
      %31 = sbr.rel target = $region3
    $region8: #{tpu_custom_call.1} parent=1 // loop_exit
      _
    %1737 = vsyncpa [#allocation5], 1
    %s1738 = scalar_lea.sflag [#allocation5], 1
    %1739 = vsyncpa %s1738, 1
    %1740 = vsyncpa [#allocation8], 1
    %s1741 = scalar_lea.sflag [#allocation8], 1
    %1742 = vsyncpa %s1741, 1
    %1743 = vsyncpa [#allocation11], 1
    %1744 = vsyncpa [#allocation14], 1
    %1745 = vsyncpa [#allocation17], 1
    %1746 = vsyncpa [#allocation20], 1
    %1747 = vsyncpa [#allocation23], 1
    %1748 = vsyncpa [#allocation6], 1
    %s1749 = scalar_lea.sflag [#allocation6], 1
    %1750 = vsyncpa %s1749, 1

</llo_original>
